<compile_context>
chip_gen: v7x
topology: tpu7x:2x2x1
jax: 0.10.0
libtpu: 0.0.40
codegen_flags: <defaults>
</compile_context>

<pallas_src>
import functools

import jax
import jax.numpy as jnp
from jax import lax
from jax.experimental import pallas as pl
from jax.experimental.pallas import tpu as pltpu


# -----------------------------------------------------------------------------
# Fused kernel: 6 LSTM layers + residual + FC, single invocation.
# -----------------------------------------------------------------------------
def _fused_residual_lstm_kernel(x_ref, wih0_ref, wihr_ref, whh_ref, b_ref,
                                res_ref, fcw_ref, fcb_ref, out_ref,
                                seq_scr, xg_scr):
    # x_ref   : (T*B, D)   time-major, flattened input sequence
    # wih0_ref: (D, 4H)    layer-0 input weights (input_size -> 4H)
    # wihr_ref: (5, H, 4H) input weights of the remaining 5 layers (H -> 4H)
    # whh_ref : (6, H, 4H) recurrent weights, all 6 layers
    # b_ref   : (6, 1, 4H) combined biases (b_ih + b_hh)
    # res_ref : (B, H)     residual (x[:, -1, :] padded/truncated to H)
    # fcw_ref : (H, O), fcb_ref: (1, O), out_ref: (B, O)
    # seq_scr : (T*B, H)   inter-layer hidden sequence (VMEM, overwritten per layer)
    # xg_scr  : (T*B, 4H)  precomputed input-gate projections (VMEM)
    B = res_ref.shape[0]
    TB = x_ref.shape[0]
    T = TB // B
    H = seq_scr.shape[-1]
    n_layers = whh_ref.shape[0]
    unroll = True if T <= 32 else 8   # unrolled short time loop => LLO overlap

    def run_layer(whh):
        """Serial recurrence over time for one layer.

        Reads the batched input-gate projections from xg_scr, writes this layer's
        hidden sequence into seq_scr in place.  Only h @ W_hh is on the critical path.
        """
        def body(t, carry):
            h, c = carry
            rows = pl.ds(t * B, B)
            gates = xg_scr[rows, :] + jnp.dot(
                h, whh, preferred_element_type=jnp.float32)      # (B, 4H)
            # PyTorch gate order: i, f, g, o (lane-aligned slices when H % 128 == 0).
            i = jax.nn.sigmoid(gates[:, 0 * H:1 * H])
            f = jax.nn.sigmoid(gates[:, 1 * H:2 * H])
            g = jnp.tanh(gates[:, 2 * H:3 * H])
            o = jax.nn.sigmoid(gates[:, 3 * H:4 * H])
            c = f * c + i * g
            h = o * jnp.tanh(c)
            seq_scr[rows, :] = h
            return h, c

        z = jnp.zeros((B, H), jnp.float32)
        lax.fori_loop(0, T, body, (z, z), unroll=unroll)

    # ---- Layer 0 (lstm1 layer 0, input width D): batched input projection ----
    xg_scr[...] = (jnp.dot(x_ref[...], wih0_ref[...],
                           preferred_element_type=jnp.float32) + b_ref[0])
    run_layer(whh_ref[0])

    # ---- Remaining 5 layers (lstm1 layers 1-2, lstm2 layers 0-2), all H -> H ----
    def layer_body(l, carry):
        xg_scr[...] = (jnp.dot(seq_scr[...], wihr_ref[l],
                               preferred_element_type=jnp.float32) + b_ref[l + 1])
        run_layer(whh_ref[l + 1])
        return carry

    lax.fori_loop(0, n_layers - 1, layer_body, 0)

    # ---- Epilogue: last timestep + residual, dropout == identity (eval), FC ----
    y = seq_scr[pl.ds((T - 1) * B, B), :] + res_ref[...]
    out_ref[...] = (jnp.dot(y, fcw_ref[...], preferred_element_type=jnp.float32)
                    + fcb_ref[...]).astype(out_ref.dtype)


# -----------------------------------------------------------------------------
# Forward wrapper: one pallas_call per forward.
# -----------------------------------------------------------------------------
def residual_lstm_forward(x, fp):
    """x: (B, T, D) batch_first (or (B, D) == seq_len 1) -> (B, output_size)."""
    x3 = x[:, None, :] if x.ndim == 2 else x
    B, T, D = x3.shape
    H = fp["whh"].shape[1]
    O = fp["fc_w"].shape[1]

    # Time-major, flattened rows: row index = t*B + b.
    x_flat = jnp.transpose(x3, (1, 0, 2)).reshape(T * B, D)

    # Residual path exactly as the PyTorch reference: truncate / zero-pad to H.
    residual = x if x.ndim == 2 else x3[:, -1, :]
    Din = residual.shape[1]
    if Din > H:
        residual = residual[:, :H]
    elif Din < H:
        residual = jnp.concatenate(
            [residual, jnp.zeros((B, H - Din), residual.dtype)], axis=1)

    return pl.pallas_call(
        _fused_residual_lstm_kernel,
        out_shape=jax.ShapeDtypeStruct((B, O), x.dtype),
        in_specs=[
            pl.BlockSpec((T * B, D), lambda: (0, 0)),
            pl.BlockSpec((D, 4 * H), lambda: (0, 0)),
            pl.BlockSpec(fp["wih_rest"].shape, lambda: (0, 0, 0)),
            pl.BlockSpec(fp["whh"].shape, lambda: (0, 0, 0)),
            pl.BlockSpec(fp["b"].shape, lambda: (0, 0, 0)),
            pl.BlockSpec((B, H), lambda: (0, 0)),
            pl.BlockSpec((H, O), lambda: (0, 0)),
            pl.BlockSpec((1, O), lambda: (0, 0)),
        ],
        out_specs=pl.BlockSpec((B, O), lambda: (0, 0)),
        scratch_shapes=[
            pltpu.VMEM((T * B, H), jnp.float32),       # inter-layer hidden sequence
            pltpu.VMEM((T * B, 4 * H), jnp.float32),   # batched input-gate projections
        ],
    )(x_flat, fp["wih0"], fp["wih_rest"], fp["whh"], fp["b"],
      residual, fp["fc_w"], fp["fc_b"])


# -----------------------------------------------------------------------------
# One-time parameter preparation (transpose / stack / bias-combine at init time).
# -----------------------------------------------------------------------------
def prepare_params(params):
    layers = list(params["lstm1"]) + list(params["lstm2"])   # 6 layers total
    return {
        "wih0": jnp.transpose(layers[0][0]),                               # (D, 4H)
        "wih_rest": jnp.stack([jnp.transpose(l[0]) for l in layers[1:]]),  # (5, H, 4H)
        "whh": jnp.stack([jnp.transpose(l[1]) for l in layers]),           # (6, H, 4H)
        "b": jnp.stack([(l[2] + l[3]).reshape(1, -1) for l in layers]),    # (6, 1, 4H)
        "fc_w": jnp.transpose(params["fc_w"]),                             # (H, O)
        "fc_b": params["fc_b"].reshape(1, -1),                             # (1, O)
    }


# -----------------------------------------------------------------------------
# Deterministic parameter init (PyTorch-style uniform(-1/sqrt(H), 1/sqrt(H))).
# -----------------------------------------------------------------------------
def init_params(key, input_size, hidden_size, output_size, num_layers=3):
    k = 1.0 / float(hidden_size) ** 0.5

    def u(kk, shape):
        return jax.random.uniform(kk, shape, jnp.float32, -k, k)

    params = {"lstm1": [], "lstm2": []}
    keys = jax.random.split(key, num_layers * 2 * 4 + 2)
    idx = 0
    for name, in_size in (("lstm1", input_size), ("lstm2", hidden_size)):
        for layer in range(num_layers):
            d = in_size if layer == 0 else hidden_size
            w_ih = u(keys[idx], (4 * hidden_size, d)); idx += 1
            w_hh = u(keys[idx], (4 * hidden_size, hidden_size)); idx += 1
            b_ih = u(keys[idx], (4 * hidden_size,)); idx += 1
            b_hh = u(keys[idx], (4 * hidden_size,)); idx += 1
            params[name].append((w_ih, w_hh, b_ih, b_hh))
    params["fc_w"] = u(keys[idx], (output_size, hidden_size)); idx += 1
    params["fc_b"] = u(keys[idx], (output_size,))
    return params


# -----------------------------------------------------------------------------
# Pure-JAX reference (for a sanity cross-check of the fused kernel).
# -----------------------------------------------------------------------------
def _reference_forward(x, params):
    x3 = x[:, None, :] if x.ndim == 2 else x
    B = x3.shape[0]

    def lstm_layer_ref(seq, w_ih, w_hh, b_ih, b_hh):
        H = w_hh.shape[1]

        def step(carry, x_t):
            h, c = carry
            gates = x_t @ w_ih.T + h @ w_hh.T + b_ih + b_hh
            i, f, g, o = jnp.split(gates, 4, axis=-1)
            i = jax.nn.sigmoid(i); f = jax.nn.sigmoid(f)
            g = jnp.tanh(g); o = jax.nn.sigmoid(o)
            c = f * c + i * g
            h = o * jnp.tanh(c)
            return (h, c), h

        h0 = jnp.zeros((seq.shape[1], H), jnp.float32)
        _, ys = lax.scan(step, (h0, h0), seq)
        return ys

    cur = jnp.transpose(x3, (1, 0, 2))
    for layer in list(params["lstm1"]) + list(params["lstm2"]):
        cur = lstm_layer_ref(cur, *layer)
    out_last = cur[-1]
    H = out_last.shape[1]
    residual = x if x.ndim == 2 else x3[:, -1, :]
    Din = residual.shape[1]
    if Din > H:
        residual = residual[:, :H]
    elif Din < H:
        residual = jnp.concatenate(
            [residual, jnp.zeros((B, H - Din), x.dtype)], axis=1)
    return (out_last + residual) @ params["fc_w"].T + params["fc_b"]


if __name__ == "__main__":
    B, T, D, H, O = 2, 8, 8, 32, 4   # batch, seq, input_size, hidden_size, output_size

    key = jax.random.PRNGKey(0)
    pkey, xkey = jax.random.split(key)
    params = init_params(pkey, D, H, O, num_layers=3)
    fused_params = prepare_params(params)
    x = jax.random.normal(xkey, (B, T, D), jnp.float32)

    fwd = jax.jit(functools.partial(residual_lstm_forward, fp=fused_params))
    out = jax.block_until_ready(fwd(x))

    assert out.shape == (B, O), out.shape
    assert jnp.all(jnp.isfinite(out))

    ref = _reference_forward(x, params)
    assert jnp.allclose(out, ref, rtol=2e-2, atol=2e-2)

    print("KERNEL_OK")
</pallas_src>

<mosaic_0001>
module attributes {stable_mosaic.version = 11 : i64} {
  func.func @_fused_residual_lstm_kernel(%arg0: memref<16x8xf32, #tpu.memory_space<vmem>>, %arg1: memref<8x128xf32, #tpu.memory_space<vmem>>, %arg2: memref<5x32x128xf32, #tpu.memory_space<vmem>>, %arg3: memref<6x32x128xf32, #tpu.memory_space<vmem>>, %arg4: memref<6x1x128xf32, #tpu.memory_space<vmem>>, %arg5: memref<2x32xf32, #tpu.memory_space<vmem>>, %arg6: memref<32x4xf32, #tpu.memory_space<vmem>>, %arg7: memref<1x4xf32, #tpu.memory_space<vmem>>, %arg8: memref<2x4xf32, #tpu.memory_space<vmem>>, %arg9: memref<16x32xf32, #tpu.memory_space<vmem>>, %arg10: memref<16x128xf32, #tpu.memory_space<vmem>>) attributes {dimension_semantics = [], scalar_prefetch = 0 : i64, scratch_operands = 2 : i64, tpu.core_type = #tpu.core_type<tc>} {
    %c0 = arith.constant 0 : index
    %c0_0 = arith.constant 0 : index
    %0 = vector.load %arg0[%c0, %c0_0] : memref<16x8xf32, #tpu.memory_space<vmem>>, vector<16x8xf32>
    %c0_1 = arith.constant 0 : index
    %c0_2 = arith.constant 0 : index
    %1 = vector.load %arg1[%c0_1, %c0_2] : memref<8x128xf32, #tpu.memory_space<vmem>>, vector<8x128xf32>
    %cst = arith.constant dense<0.000000e+00> : vector<16x128xf32>
    %2 = tpu.matmul %0, %1, %cst {dimension_numbers = #tpu.dot_dimension_numbers<[1], [0], [0], [1], [0, 0, 1, 1], [], []>} : vector<16x8xf32>, vector<8x128xf32>, vector<16x128xf32> -> vector<16x128xf32>
    %c0_3 = arith.constant 0 : index
    %c0_4 = arith.constant 0 : index
    %c0_5 = arith.constant 0 : index
    %3 = vector.load %arg4[%c0_3, %c0_4, %c0_5] : memref<6x1x128xf32, #tpu.memory_space<vmem>>, vector<1x1x128xf32>
    %4 = vector.shape_cast %3 : vector<1x1x128xf32> to vector<1x128xf32>
    %5 = vector.broadcast %4 : vector<1x128xf32> to vector<16x128xf32>
    %6 = arith.addf %2, %5 : vector<16x128xf32>
    %c0_6 = arith.constant 0 : index
    %c0_7 = arith.constant 0 : index
    %7 = vector.load %arg10[%c0_6, %c0_7] : memref<16x128xf32, #tpu.memory_space<vmem>>, vector<16x128xf32>
    tpu.vector_store %arg10[%c0_6, %c0_7], %6 {strides = array<i32>} : memref<16x128xf32, #tpu.memory_space<vmem>>, vector<16x128xf32>,
    %c0_8 = arith.constant 0 : index
    %c0_9 = arith.constant 0 : index
    %c0_10 = arith.constant 0 : index
    %8 = vector.load %arg3[%c0_8, %c0_9, %c0_10] : memref<6x32x128xf32, #tpu.memory_space<vmem>>, vector<1x32x128xf32>
    %9 = vector.shape_cast %8 : vector<1x32x128xf32> to vector<32x128xf32>
    %cst_11 = arith.constant 0.000000e+00 : f32
    %10 = vector.broadcast %cst_11 : f32 to vector<2x32xf32>
    %c0_i32 = arith.constant 0 : i32
    %c2_i32 = arith.constant 2 : i32
    %11 = arith.muli %c0_i32, %c2_i32 : i32
    %12 = arith.index_cast %11 : i32 to index
    %c0_12 = arith.constant 0 : index
    %13 = vector.load %arg10[%12, %c0_12] : memref<16x128xf32, #tpu.memory_space<vmem>>, vector<2x128xf32>
    %cst_13 = arith.constant dense<0.000000e+00> : vector<2x128xf32>
    %14 = tpu.matmul %10, %9, %cst_13 {dimension_numbers = #tpu.dot_dimension_numbers<[1], [0], [0], [1], [0, 0, 1, 1], [], []>} : vector<2x32xf32>, vector<32x128xf32>, vector<2x128xf32> -> vector<2x128xf32>
    %15 = arith.addf %13, %14 : vector<2x128xf32>
    %16 = vector.extract_strided_slice %15 {offsets = [0, 0], sizes = [2, 32], strides = [1, 1]} : vector<2x128xf32> to vector<2x32xf32>
    %17 = arith.negf %16 : vector<2x32xf32>
    %18 = math.exp %17 : vector<2x32xf32>
    %cst_14 = arith.constant 1.000000e+00 : f32
    %19 = vector.broadcast %cst_14 : f32 to vector<2x32xf32>
    %20 = arith.addf %19, %18 : vector<2x32xf32>
    %21 = arith.divf %19, %20 : vector<2x32xf32>
    %22 = vector.extract_strided_slice %15 {offsets = [0, 32], sizes = [2, 32], strides = [1, 1]} : vector<2x128xf32> to vector<2x32xf32>
    %23 = arith.negf %22 : vector<2x32xf32>
    %24 = math.exp %23 : vector<2x32xf32>
    %cst_15 = arith.constant 1.000000e+00 : f32
    %25 = vector.broadcast %cst_15 : f32 to vector<2x32xf32>
    %26 = arith.addf %25, %24 : vector<2x32xf32>
    %27 = arith.divf %25, %26 : vector<2x32xf32>
    %28 = vector.extract_strided_slice %15 {offsets = [0, 64], sizes = [2, 32], strides = [1, 1]} : vector<2x128xf32> to vector<2x32xf32>
    %29 = math.tanh %28 : vector<2x32xf32>
    %30 = vector.extract_strided_slice %15 {offsets = [0, 96], sizes = [2, 32], strides = [1, 1]} : vector<2x128xf32> to vector<2x32xf32>
    %31 = arith.negf %30 : vector<2x32xf32>
    %32 = math.exp %31 : vector<2x32xf32>
    %cst_16 = arith.constant 1.000000e+00 : f32
    %33 = vector.broadcast %cst_16 : f32 to vector<2x32xf32>
    %34 = arith.addf %33, %32 : vector<2x32xf32>
    %35 = arith.divf %33, %34 : vector<2x32xf32>
    %36 = arith.mulf %27, %10 : vector<2x32xf32>
    %37 = arith.mulf %21, %29 : vector<2x32xf32>
    %38 = arith.addf %36, %37 : vector<2x32xf32>
    %39 = math.tanh %38 : vector<2x32xf32>
    %40 = arith.mulf %35, %39 : vector<2x32xf32>
    %41 = arith.index_cast %11 : i32 to index
    %c0_17 = arith.constant 0 : index
    %42 = vector.load %arg9[%41, %c0_17] : memref<16x32xf32, #tpu.memory_space<vmem>>, vector<2x32xf32>
    tpu.vector_store %arg9[%41, %c0_17], %40 {strides = array<i32>} : memref<16x32xf32, #tpu.memory_space<vmem>>, vector<2x32xf32>,
    %c1_i32 = arith.constant 1 : i32
    %c2_i32_18 = arith.constant 2 : i32
    %43 = arith.muli %c1_i32, %c2_i32_18 : i32
    %44 = arith.index_cast %43 : i32 to index
    %c0_19 = arith.constant 0 : index
    %45 = vector.load %arg10[%44, %c0_19] : memref<16x128xf32, #tpu.memory_space<vmem>>, vector<2x128xf32>
    %cst_20 = arith.constant dense<0.000000e+00> : vector<2x128xf32>
    %46 = tpu.matmul %40, %9, %cst_20 {dimension_numbers = #tpu.dot_dimension_numbers<[1], [0], [0], [1], [0, 0, 1, 1], [], []>} : vector<2x32xf32>, vector<32x128xf32>, vector<2x128xf32> -> vector<2x128xf32>
    %47 = arith.addf %45, %46 : vector<2x128xf32>
    %48 = vector.extract_strided_slice %47 {offsets = [0, 0], sizes = [2, 32], strides = [1, 1]} : vector<2x128xf32> to vector<2x32xf32>
    %49 = arith.negf %48 : vector<2x32xf32>
    %50 = math.exp %49 : vector<2x32xf32>
    %cst_21 = arith.constant 1.000000e+00 : f32
    %51 = vector.broadcast %cst_21 : f32 to vector<2x32xf32>
    %52 = arith.addf %51, %50 : vector<2x32xf32>
    %53 = arith.divf %51, %52 : vector<2x32xf32>
    %54 = vector.extract_strided_slice %47 {offsets = [0, 32], sizes = [2, 32], strides = [1, 1]} : vector<2x128xf32> to vector<2x32xf32>
    %55 = arith.negf %54 : vector<2x32xf32>
    %56 = math.exp %55 : vector<2x32xf32>
    %cst_22 = arith.constant 1.000000e+00 : f32
    %57 = vector.broadcast %cst_22 : f32 to vector<2x32xf32>
    %58 = arith.addf %57, %56 : vector<2x32xf32>
    %59 = arith.divf %57, %58 : vector<2x32xf32>
    %60 = vector.extract_strided_slice %47 {offsets = [0, 64], sizes = [2, 32], strides = [1, 1]} : vector<2x128xf32> to vector<2x32xf32>
    %61 = math.tanh %60 : vector<2x32xf32>
    %62 = vector.extract_strided_slice %47 {offsets = [0, 96], sizes = [2, 32], strides = [1, 1]} : vector<2x128xf32> to vector<2x32xf32>
    %63 = arith.negf %62 : vector<2x32xf32>
    %64 = math.exp %63 : vector<2x32xf32>
    %cst_23 = arith.constant 1.000000e+00 : f32
    %65 = vector.broadcast %cst_23 : f32 to vector<2x32xf32>
    %66 = arith.addf %65, %64 : vector<2x32xf32>
    %67 = arith.divf %65, %66 : vector<2x32xf32>
    %68 = arith.mulf %59, %38 : vector<2x32xf32>
    %69 = arith.mulf %53, %61 : vector<2x32xf32>
    %70 = arith.addf %68, %69 : vector<2x32xf32>
    %71 = math.tanh %70 : vector<2x32xf32>
    %72 = arith.mulf %67, %71 : vector<2x32xf32>
    %73 = arith.index_cast %43 : i32 to index
    %c0_24 = arith.constant 0 : index
    %74 = vector.load %arg9[%73, %c0_24] : memref<16x32xf32, #tpu.memory_space<vmem>>, vector<2x32xf32>
    tpu.vector_store %arg9[%73, %c0_24], %72 {strides = array<i32>} : memref<16x32xf32, #tpu.memory_space<vmem>>, vector<2x32xf32>,
    %c2_i32_25 = arith.constant 2 : i32
    %c2_i32_26 = arith.constant 2 : i32
    %75 = arith.muli %c2_i32_25, %c2_i32_26 : i32
    %76 = arith.index_cast %75 : i32 to index
    %c0_27 = arith.constant 0 : index
    %77 = vector.load %arg10[%76, %c0_27] : memref<16x128xf32, #tpu.memory_space<vmem>>, vector<2x128xf32>
    %cst_28 = arith.constant dense<0.000000e+00> : vector<2x128xf32>
    %78 = tpu.matmul %72, %9, %cst_28 {dimension_numbers = #tpu.dot_dimension_numbers<[1], [0], [0], [1], [0, 0, 1, 1], [], []>} : vector<2x32xf32>, vector<32x128xf32>, vector<2x128xf32> -> vector<2x128xf32>
    %79 = arith.addf %77, %78 : vector<2x128xf32>
    %80 = vector.extract_strided_slice %79 {offsets = [0, 0], sizes = [2, 32], strides = [1, 1]} : vector<2x128xf32> to vector<2x32xf32>
    %81 = arith.negf %80 : vector<2x32xf32>
    %82 = math.exp %81 : vector<2x32xf32>
    %cst_29 = arith.constant 1.000000e+00 : f32
    %83 = vector.broadcast %cst_29 : f32 to vector<2x32xf32>
    %84 = arith.addf %83, %82 : vector<2x32xf32>
    %85 = arith.divf %83, %84 : vector<2x32xf32>
    %86 = vector.extract_strided_slice %79 {offsets = [0, 32], sizes = [2, 32], strides = [1, 1]} : vector<2x128xf32> to vector<2x32xf32>
    %87 = arith.negf %86 : vector<2x32xf32>
    %88 = math.exp %87 : vector<2x32xf32>
    %cst_30 = arith.constant 1.000000e+00 : f32
    %89 = vector.broadcast %cst_30 : f32 to vector<2x32xf32>
    %90 = arith.addf %89, %88 : vector<2x32xf32>
    %91 = arith.divf %89, %90 : vector<2x32xf32>
    %92 = vector.extract_strided_slice %79 {offsets = [0, 64], sizes = [2, 32], strides = [1, 1]} : vector<2x128xf32> to vector<2x32xf32>
    %93 = math.tanh %92 : vector<2x32xf32>
    %94 = vector.extract_strided_slice %79 {offsets = [0, 96], sizes = [2, 32], strides = [1, 1]} : vector<2x128xf32> to vector<2x32xf32>
    %95 = arith.negf %94 : vector<2x32xf32>
    %96 = math.exp %95 : vector<2x32xf32>
    %cst_31 = arith.constant 1.000000e+00 : f32
    %97 = vector.broadcast %cst_31 : f32 to vector<2x32xf32>
    %98 = arith.addf %97, %96 : vector<2x32xf32>
    %99 = arith.divf %97, %98 : vector<2x32xf32>
    %100 = arith.mulf %91, %70 : vector<2x32xf32>
    %101 = arith.mulf %85, %93 : vector<2x32xf32>
    %102 = arith.addf %100, %101 : vector<2x32xf32>
    %103 = math.tanh %102 : vector<2x32xf32>
    %104 = arith.mulf %99, %103 : vector<2x32xf32>
    %105 = arith.index_cast %75 : i32 to index
    %c0_32 = arith.constant 0 : index
    %106 = vector.load %arg9[%105, %c0_32] : memref<16x32xf32, #tpu.memory_space<vmem>>, vector<2x32xf32>
    tpu.vector_store %arg9[%105, %c0_32], %104 {strides = array<i32>} : memref<16x32xf32, #tpu.memory_space<vmem>>, vector<2x32xf32>,
    %c3_i32 = arith.constant 3 : i32
    %c2_i32_33 = arith.constant 2 : i32
    %107 = arith.muli %c3_i32, %c2_i32_33 : i32
    %108 = arith.index_cast %107 : i32 to index
    %c0_34 = arith.constant 0 : index
    %109 = vector.load %arg10[%108, %c0_34] : memref<16x128xf32, #tpu.memory_space<vmem>>, vector<2x128xf32>
    %cst_35 = arith.constant dense<0.000000e+00> : vector<2x128xf32>
    %110 = tpu.matmul %104, %9, %cst_35 {dimension_numbers = #tpu.dot_dimension_numbers<[1], [0], [0], [1], [0, 0, 1, 1], [], []>} : vector<2x32xf32>, vector<32x128xf32>, vector<2x128xf32> -> vector<2x128xf32>
    %111 = arith.addf %109, %110 : vector<2x128xf32>
    %112 = vector.extract_strided_slice %111 {offsets = [0, 0], sizes = [2, 32], strides = [1, 1]} : vector<2x128xf32> to vector<2x32xf32>
    %113 = arith.negf %112 : vector<2x32xf32>
    %114 = math.exp %113 : vector<2x32xf32>
    %cst_36 = arith.constant 1.000000e+00 : f32
    %115 = vector.broadcast %cst_36 : f32 to vector<2x32xf32>
    %116 = arith.addf %115, %114 : vector<2x32xf32>
    %117 = arith.divf %115, %116 : vector<2x32xf32>
    %118 = vector.extract_strided_slice %111 {offsets = [0, 32], sizes = [2, 32], strides = [1, 1]} : vector<2x128xf32> to vector<2x32xf32>
    %119 = arith.negf %118 : vector<2x32xf32>
    %120 = math.exp %119 : vector<2x32xf32>
    %cst_37 = arith.constant 1.000000e+00 : f32
    %121 = vector.broadcast %cst_37 : f32 to vector<2x32xf32>
    %122 = arith.addf %121, %120 : vector<2x32xf32>
    %123 = arith.divf %121, %122 : vector<2x32xf32>
    %124 = vector.extract_strided_slice %111 {offsets = [0, 64], sizes = [2, 32], strides = [1, 1]} : vector<2x128xf32> to vector<2x32xf32>
    %125 = math.tanh %124 : vector<2x32xf32>
    %126 = vector.extract_strided_slice %111 {offsets = [0, 96], sizes = [2, 32], strides = [1, 1]} : vector<2x128xf32> to vector<2x32xf32>
    %127 = arith.negf %126 : vector<2x32xf32>
    %128 = math.exp %127 : vector<2x32xf32>
    %cst_38 = arith.constant 1.000000e+00 : f32
    %129 = vector.broadcast %cst_38 : f32 to vector<2x32xf32>
    %130 = arith.addf %129, %128 : vector<2x32xf32>
    %131 = arith.divf %129, %130 : vector<2x32xf32>
    %132 = arith.mulf %123, %102 : vector<2x32xf32>
    %133 = arith.mulf %117, %125 : vector<2x32xf32>
    %134 = arith.addf %132, %133 : vector<2x32xf32>
    %135 = math.tanh %134 : vector<2x32xf32>
    %136 = arith.mulf %131, %135 : vector<2x32xf32>
    %137 = arith.index_cast %107 : i32 to index
    %c0_39 = arith.constant 0 : index
    %138 = vector.load %arg9[%137, %c0_39] : memref<16x32xf32, #tpu.memory_space<vmem>>, vector<2x32xf32>
    tpu.vector_store %arg9[%137, %c0_39], %136 {strides = array<i32>} : memref<16x32xf32, #tpu.memory_space<vmem>>, vector<2x32xf32>,
    %c4_i32 = arith.constant 4 : i32
    %c2_i32_40 = arith.constant 2 : i32
    %139 = arith.muli %c4_i32, %c2_i32_40 : i32
    %140 = arith.index_cast %139 : i32 to index
    %c0_41 = arith.constant 0 : index
    %141 = vector.load %arg10[%140, %c0_41] : memref<16x128xf32, #tpu.memory_space<vmem>>, vector<2x128xf32>
    %cst_42 = arith.constant dense<0.000000e+00> : vector<2x128xf32>
    %142 = tpu.matmul %136, %9, %cst_42 {dimension_numbers = #tpu.dot_dimension_numbers<[1], [0], [0], [1], [0, 0, 1, 1], [], []>} : vector<2x32xf32>, vector<32x128xf32>, vector<2x128xf32> -> vector<2x128xf32>
    %143 = arith.addf %141, %142 : vector<2x128xf32>
    %144 = vector.extract_strided_slice %143 {offsets = [0, 0], sizes = [2, 32], strides = [1, 1]} : vector<2x128xf32> to vector<2x32xf32>
    %145 = arith.negf %144 : vector<2x32xf32>
    %146 = math.exp %145 : vector<2x32xf32>
    %cst_43 = arith.constant 1.000000e+00 : f32
    %147 = vector.broadcast %cst_43 : f32 to vector<2x32xf32>
    %148 = arith.addf %147, %146 : vector<2x32xf32>
    %149 = arith.divf %147, %148 : vector<2x32xf32>
    %150 = vector.extract_strided_slice %143 {offsets = [0, 32], sizes = [2, 32], strides = [1, 1]} : vector<2x128xf32> to vector<2x32xf32>
    %151 = arith.negf %150 : vector<2x32xf32>
    %152 = math.exp %151 : vector<2x32xf32>
    %cst_44 = arith.constant 1.000000e+00 : f32
    %153 = vector.broadcast %cst_44 : f32 to vector<2x32xf32>
    %154 = arith.addf %153, %152 : vector<2x32xf32>
    %155 = arith.divf %153, %154 : vector<2x32xf32>
    %156 = vector.extract_strided_slice %143 {offsets = [0, 64], sizes = [2, 32], strides = [1, 1]} : vector<2x128xf32> to vector<2x32xf32>
    %157 = math.tanh %156 : vector<2x32xf32>
    %158 = vector.extract_strided_slice %143 {offsets = [0, 96], sizes = [2, 32], strides = [1, 1]} : vector<2x128xf32> to vector<2x32xf32>
    %159 = arith.negf %158 : vector<2x32xf32>
    %160 = math.exp %159 : vector<2x32xf32>
    %cst_45 = arith.constant 1.000000e+00 : f32
    %161 = vector.broadcast %cst_45 : f32 to vector<2x32xf32>
    %162 = arith.addf %161, %160 : vector<2x32xf32>
    %163 = arith.divf %161, %162 : vector<2x32xf32>
    %164 = arith.mulf %155, %134 : vector<2x32xf32>
    %165 = arith.mulf %149, %157 : vector<2x32xf32>
    %166 = arith.addf %164, %165 : vector<2x32xf32>
    %167 = math.tanh %166 : vector<2x32xf32>
    %168 = arith.mulf %163, %167 : vector<2x32xf32>
    %169 = arith.index_cast %139 : i32 to index
    %c0_46 = arith.constant 0 : index
    %170 = vector.load %arg9[%169, %c0_46] : memref<16x32xf32, #tpu.memory_space<vmem>>, vector<2x32xf32>
    tpu.vector_store %arg9[%169, %c0_46], %168 {strides = array<i32>} : memref<16x32xf32, #tpu.memory_space<vmem>>, vector<2x32xf32>,
    %c5_i32 = arith.constant 5 : i32
    %c2_i32_47 = arith.constant 2 : i32
    %171 = arith.muli %c5_i32, %c2_i32_47 : i32
    %172 = arith.index_cast %171 : i32 to index
    %c0_48 = arith.constant 0 : index
    %173 = vector.load %arg10[%172, %c0_48] : memref<16x128xf32, #tpu.memory_space<vmem>>, vector<2x128xf32>
    %cst_49 = arith.constant dense<0.000000e+00> : vector<2x128xf32>
    %174 = tpu.matmul %168, %9, %cst_49 {dimension_numbers = #tpu.dot_dimension_numbers<[1], [0], [0], [1], [0, 0, 1, 1], [], []>} : vector<2x32xf32>, vector<32x128xf32>, vector<2x128xf32> -> vector<2x128xf32>
    %175 = arith.addf %173, %174 : vector<2x128xf32>
    %176 = vector.extract_strided_slice %175 {offsets = [0, 0], sizes = [2, 32], strides = [1, 1]} : vector<2x128xf32> to vector<2x32xf32>
    %177 = arith.negf %176 : vector<2x32xf32>
    %178 = math.exp %177 : vector<2x32xf32>
    %cst_50 = arith.constant 1.000000e+00 : f32
    %179 = vector.broadcast %cst_50 : f32 to vector<2x32xf32>
    %180 = arith.addf %179, %178 : vector<2x32xf32>
    %181 = arith.divf %179, %180 : vector<2x32xf32>
    %182 = vector.extract_strided_slice %175 {offsets = [0, 32], sizes = [2, 32], strides = [1, 1]} : vector<2x128xf32> to vector<2x32xf32>
    %183 = arith.negf %182 : vector<2x32xf32>
    %184 = math.exp %183 : vector<2x32xf32>
    %cst_51 = arith.constant 1.000000e+00 : f32
    %185 = vector.broadcast %cst_51 : f32 to vector<2x32xf32>
    %186 = arith.addf %185, %184 : vector<2x32xf32>
    %187 = arith.divf %185, %186 : vector<2x32xf32>
    %188 = vector.extract_strided_slice %175 {offsets = [0, 64], sizes = [2, 32], strides = [1, 1]} : vector<2x128xf32> to vector<2x32xf32>
    %189 = math.tanh %188 : vector<2x32xf32>
    %190 = vector.extract_strided_slice %175 {offsets = [0, 96], sizes = [2, 32], strides = [1, 1]} : vector<2x128xf32> to vector<2x32xf32>
    %191 = arith.negf %190 : vector<2x32xf32>
    %192 = math.exp %191 : vector<2x32xf32>
    %cst_52 = arith.constant 1.000000e+00 : f32
    %193 = vector.broadcast %cst_52 : f32 to vector<2x32xf32>
    %194 = arith.addf %193, %192 : vector<2x32xf32>
    %195 = arith.divf %193, %194 : vector<2x32xf32>
    %196 = arith.mulf %187, %166 : vector<2x32xf32>
    %197 = arith.mulf %181, %189 : vector<2x32xf32>
    %198 = arith.addf %196, %197 : vector<2x32xf32>
    %199 = math.tanh %198 : vector<2x32xf32>
    %200 = arith.mulf %195, %199 : vector<2x32xf32>
    %201 = arith.index_cast %171 : i32 to index
    %c0_53 = arith.constant 0 : index
    %202 = vector.load %arg9[%201, %c0_53] : memref<16x32xf32, #tpu.memory_space<vmem>>, vector<2x32xf32>
    tpu.vector_store %arg9[%201, %c0_53], %200 {strides = array<i32>} : memref<16x32xf32, #tpu.memory_space<vmem>>, vector<2x32xf32>,
    %c6_i32 = arith.constant 6 : i32
    %c2_i32_54 = arith.constant 2 : i32
    %203 = arith.muli %c6_i32, %c2_i32_54 : i32
    %204 = arith.index_cast %203 : i32 to index
    %c0_55 = arith.constant 0 : index
    %205 = vector.load %arg10[%204, %c0_55] : memref<16x128xf32, #tpu.memory_space<vmem>>, vector<2x128xf32>
    %cst_56 = arith.constant dense<0.000000e+00> : vector<2x128xf32>
    %206 = tpu.matmul %200, %9, %cst_56 {dimension_numbers = #tpu.dot_dimension_numbers<[1], [0], [0], [1], [0, 0, 1, 1], [], []>} : vector<2x32xf32>, vector<32x128xf32>, vector<2x128xf32> -> vector<2x128xf32>
    %207 = arith.addf %205, %206 : vector<2x128xf32>
    %208 = vector.extract_strided_slice %207 {offsets = [0, 0], sizes = [2, 32], strides = [1, 1]} : vector<2x128xf32> to vector<2x32xf32>
    %209 = arith.negf %208 : vector<2x32xf32>
    %210 = math.exp %209 : vector<2x32xf32>
    %cst_57 = arith.constant 1.000000e+00 : f32
    %211 = vector.broadcast %cst_57 : f32 to vector<2x32xf32>
    %212 = arith.addf %211, %210 : vector<2x32xf32>
    %213 = arith.divf %211, %212 : vector<2x32xf32>
    %214 = vector.extract_strided_slice %207 {offsets = [0, 32], sizes = [2, 32], strides = [1, 1]} : vector<2x128xf32> to vector<2x32xf32>
    %215 = arith.negf %214 : vector<2x32xf32>
    %216 = math.exp %215 : vector<2x32xf32>
    %cst_58 = arith.constant 1.000000e+00 : f32
    %217 = vector.broadcast %cst_58 : f32 to vector<2x32xf32>
    %218 = arith.addf %217, %216 : vector<2x32xf32>
    %219 = arith.divf %217, %218 : vector<2x32xf32>
    %220 = vector.extract_strided_slice %207 {offsets = [0, 64], sizes = [2, 32], strides = [1, 1]} : vector<2x128xf32> to vector<2x32xf32>
    %221 = math.tanh %220 : vector<2x32xf32>
    %222 = vector.extract_strided_slice %207 {offsets = [0, 96], sizes = [2, 32], strides = [1, 1]} : vector<2x128xf32> to vector<2x32xf32>
    %223 = arith.negf %222 : vector<2x32xf32>
    %224 = math.exp %223 : vector<2x32xf32>
    %cst_59 = arith.constant 1.000000e+00 : f32
    %225 = vector.broadcast %cst_59 : f32 to vector<2x32xf32>
    %226 = arith.addf %225, %224 : vector<2x32xf32>
    %227 = arith.divf %225, %226 : vector<2x32xf32>
    %228 = arith.mulf %219, %198 : vector<2x32xf32>
    %229 = arith.mulf %213, %221 : vector<2x32xf32>
    %230 = arith.addf %228, %229 : vector<2x32xf32>
    %231 = math.tanh %230 : vector<2x32xf32>
    %232 = arith.mulf %227, %231 : vector<2x32xf32>
    %233 = arith.index_cast %203 : i32 to index
    %c0_60 = arith.constant 0 : index
    %234 = vector.load %arg9[%233, %c0_60] : memref<16x32xf32, #tpu.memory_space<vmem>>, vector<2x32xf32>
    tpu.vector_store %arg9[%233, %c0_60], %232 {strides = array<i32>} : memref<16x32xf32, #tpu.memory_space<vmem>>, vector<2x32xf32>,
    %c7_i32 = arith.constant 7 : i32
    %c2_i32_61 = arith.constant 2 : i32
    %235 = arith.muli %c7_i32, %c2_i32_61 : i32
    %236 = arith.index_cast %235 : i32 to index
    %c0_62 = arith.constant 0 : index
    %237 = vector.load %arg10[%236, %c0_62] : memref<16x128xf32, #tpu.memory_space<vmem>>, vector<2x128xf32>
    %cst_63 = arith.constant dense<0.000000e+00> : vector<2x128xf32>
    %238 = tpu.matmul %232, %9, %cst_63 {dimension_numbers = #tpu.dot_dimension_numbers<[1], [0], [0], [1], [0, 0, 1, 1], [], []>} : vector<2x32xf32>, vector<32x128xf32>, vector<2x128xf32> -> vector<2x128xf32>
    %239 = arith.addf %237, %238 : vector<2x128xf32>
    %240 = vector.extract_strided_slice %239 {offsets = [0, 0], sizes = [2, 32], strides = [1, 1]} : vector<2x128xf32> to vector<2x32xf32>
    %241 = arith.negf %240 : vector<2x32xf32>
    %242 = math.exp %241 : vector<2x32xf32>
    %cst_64 = arith.constant 1.000000e+00 : f32
    %243 = vector.broadcast %cst_64 : f32 to vector<2x32xf32>
    %244 = arith.addf %243, %242 : vector<2x32xf32>
    %245 = arith.divf %243, %244 : vector<2x32xf32>
    %246 = vector.extract_strided_slice %239 {offsets = [0, 32], sizes = [2, 32], strides = [1, 1]} : vector<2x128xf32> to vector<2x32xf32>
    %247 = arith.negf %246 : vector<2x32xf32>
    %248 = math.exp %247 : vector<2x32xf32>
    %cst_65 = arith.constant 1.000000e+00 : f32
    %249 = vector.broadcast %cst_65 : f32 to vector<2x32xf32>
    %250 = arith.addf %249, %248 : vector<2x32xf32>
    %251 = arith.divf %249, %250 : vector<2x32xf32>
    %252 = vector.extract_strided_slice %239 {offsets = [0, 64], sizes = [2, 32], strides = [1, 1]} : vector<2x128xf32> to vector<2x32xf32>
    %253 = math.tanh %252 : vector<2x32xf32>
    %254 = vector.extract_strided_slice %239 {offsets = [0, 96], sizes = [2, 32], strides = [1, 1]} : vector<2x128xf32> to vector<2x32xf32>
    %255 = arith.negf %254 : vector<2x32xf32>
    %256 = math.exp %255 : vector<2x32xf32>
    %cst_66 = arith.constant 1.000000e+00 : f32
    %257 = vector.broadcast %cst_66 : f32 to vector<2x32xf32>
    %258 = arith.addf %257, %256 : vector<2x32xf32>
    %259 = arith.divf %257, %258 : vector<2x32xf32>
    %260 = arith.mulf %251, %230 : vector<2x32xf32>
    %261 = arith.mulf %245, %253 : vector<2x32xf32>
    %262 = arith.addf %260, %261 : vector<2x32xf32>
    %263 = math.tanh %262 : vector<2x32xf32>
    %264 = arith.mulf %259, %263 : vector<2x32xf32>
    %265 = arith.index_cast %235 : i32 to index
    %c0_67 = arith.constant 0 : index
    %266 = vector.load %arg9[%265, %c0_67] : memref<16x32xf32, #tpu.memory_space<vmem>>, vector<2x32xf32>
    tpu.vector_store %arg9[%265, %c0_67], %264 {strides = array<i32>} : memref<16x32xf32, #tpu.memory_space<vmem>>, vector<2x32xf32>,
    %c8_i32 = arith.constant 8 : i32
    %c0_i32_68 = arith.constant 0 : i32
    %c5_i32_69 = arith.constant 5 : i32
    %267 = arith.addi %c0_i32_68, %c5_i32_69 : i32
    %c1_i32_70 = arith.constant 1 : i32
    scf.for %arg11 = %c0_i32_68 to %267 step %c1_i32_70  : i32 {
      %c0_82 = arith.constant 0 : index
      %c0_83 = arith.constant 0 : index
      %277 = vector.load %arg9[%c0_82, %c0_83] : memref<16x32xf32, #tpu.memory_space<vmem>>, vector<16x32xf32>
      %278 = arith.index_cast %arg11 : i32 to index
      %c0_84 = arith.constant 0 : index
      %c0_85 = arith.constant 0 : index
      %279 = vector.load %arg2[%278, %c0_84, %c0_85] : memref<5x32x128xf32, #tpu.memory_space<vmem>>, vector<1x32x128xf32>
      %280 = vector.shape_cast %279 : vector<1x32x128xf32> to vector<32x128xf32>
      %cst_86 = arith.constant dense<0.000000e+00> : vector<16x128xf32>
      %281 = tpu.matmul %277, %280, %cst_86 {dimension_numbers = #tpu.dot_dimension_numbers<[1], [0], [0], [1], [0, 0, 1, 1], [], []>} : vector<16x32xf32>, vector<32x128xf32>, vector<16x128xf32> -> vector<16x128xf32>
      %c1_i32_87 = arith.constant 1 : i32
      %282 = arith.addi %arg11, %c1_i32_87 : i32
      %283 = arith.index_cast %282 : i32 to index
      %c0_88 = arith.constant 0 : index
      %c0_89 = arith.constant 0 : index
      %284 = vector.load %arg4[%283, %c0_88, %c0_89] : memref<6x1x128xf32, #tpu.memory_space<vmem>>, vector<1x1x128xf32>
      %285 = vector.shape_cast %284 : vector<1x1x128xf32> to vector<1x128xf32>
      %286 = vector.broadcast %285 : vector<1x128xf32> to vector<16x128xf32>
      %287 = arith.addf %281, %286 : vector<16x128xf32>
      %c0_90 = arith.constant 0 : index
      %c0_91 = arith.constant 0 : index
      %288 = vector.load %arg10[%c0_90, %c0_91] : memref<16x128xf32, #tpu.memory_space<vmem>>, vector<16x128xf32>
      tpu.vector_store %arg10[%c0_90, %c0_91], %287 {strides = array<i32>} : memref<16x128xf32, #tpu.memory_space<vmem>>, vector<16x128xf32>,
      %c1_i32_92 = arith.constant 1 : i32
      %289 = arith.addi %arg11, %c1_i32_92 : i32
      %290 = arith.index_cast %289 : i32 to index
      %c0_93 = arith.constant 0 : index
      %c0_94 = arith.constant 0 : index
      %291 = vector.load %arg3[%290, %c0_93, %c0_94] : memref<6x32x128xf32, #tpu.memory_space<vmem>>, vector<1x32x128xf32>
      %292 = vector.shape_cast %291 : vector<1x32x128xf32> to vector<32x128xf32>
      %cst_95 = arith.constant 0.000000e+00 : f32
      %293 = vector.broadcast %cst_95 : f32 to vector<2x32xf32>
      %c0_i32_96 = arith.constant 0 : i32
      %c2_i32_97 = arith.constant 2 : i32
      %294 = arith.muli %c0_i32_96, %c2_i32_97 : i32
      %295 = arith.index_cast %294 : i32 to index
      %c0_98 = arith.constant 0 : index
      %296 = vector.load %arg10[%295, %c0_98] : memref<16x128xf32, #tpu.memory_space<vmem>>, vector<2x128xf32>
      %cst_99 = arith.constant dense<0.000000e+00> : vector<2x128xf32>
      %297 = tpu.matmul %293, %292, %cst_99 {dimension_numbers = #tpu.dot_dimension_numbers<[1], [0], [0], [1], [0, 0, 1, 1], [], []>} : vector<2x32xf32>, vector<32x128xf32>, vector<2x128xf32> -> vector<2x128xf32>
      %298 = arith.addf %296, %297 : vector<2x128xf32>
      %299 = vector.extract_strided_slice %298 {offsets = [0, 0], sizes = [2, 32], strides = [1, 1]} : vector<2x128xf32> to vector<2x32xf32>
      %300 = arith.negf %299 : vector<2x32xf32>
      %301 = math.exp %300 : vector<2x32xf32>
      %cst_100 = arith.constant 1.000000e+00 : f32
      %302 = vector.broadcast %cst_100 : f32 to vector<2x32xf32>
      %303 = arith.addf %302, %301 : vector<2x32xf32>
      %304 = arith.divf %302, %303 : vector<2x32xf32>
      %305 = vector.extract_strided_slice %298 {offsets = [0, 32], sizes = [2, 32], strides = [1, 1]} : vector<2x128xf32> to vector<2x32xf32>
      %306 = arith.negf %305 : vector<2x32xf32>
      %307 = math.exp %306 : vector<2x32xf32>
      %cst_101 = arith.constant 1.000000e+00 : f32
      %308 = vector.broadcast %cst_101 : f32 to vector<2x32xf32>
      %309 = arith.addf %308, %307 : vector<2x32xf32>
      %310 = arith.divf %308, %309 : vector<2x32xf32>
      %311 = vector.extract_strided_slice %298 {offsets = [0, 64], sizes = [2, 32], strides = [1, 1]} : vector<2x128xf32> to vector<2x32xf32>
      %312 = math.tanh %311 : vector<2x32xf32>
      %313 = vector.extract_strided_slice %298 {offsets = [0, 96], sizes = [2, 32], strides = [1, 1]} : vector<2x128xf32> to vector<2x32xf32>
      %314 = arith.negf %313 : vector<2x32xf32>
      %315 = math.exp %314 : vector<2x32xf32>
      %cst_102 = arith.constant 1.000000e+00 : f32
      %316 = vector.broadcast %cst_102 : f32 to vector<2x32xf32>
      %317 = arith.addf %316, %315 : vector<2x32xf32>
      %318 = arith.divf %316, %317 : vector<2x32xf32>
      %319 = arith.mulf %310, %293 : vector<2x32xf32>
      %320 = arith.mulf %304, %312 : vector<2x32xf32>
      %321 = arith.addf %319, %320 : vector<2x32xf32>
      %322 = math.tanh %321 : vector<2x32xf32>
      %323 = arith.mulf %318, %322 : vector<2x32xf32>
      %324 = arith.index_cast %294 : i32 to index
      %c0_103 = arith.constant 0 : index
      %325 = vector.load %arg9[%324, %c0_103] : memref<16x32xf32, #tpu.memory_space<vmem>>, vector<2x32xf32>
      tpu.vector_store %arg9[%324, %c0_103], %323 {strides = array<i32>} : memref<16x32xf32, #tpu.memory_space<vmem>>, vector<2x32xf32>,
      %c1_i32_104 = arith.constant 1 : i32
      %c2_i32_105 = arith.constant 2 : i32
      %326 = arith.muli %c1_i32_104, %c2_i32_105 : i32
      %327 = arith.index_cast %326 : i32 to index
      %c0_106 = arith.constant 0 : index
      %328 = vector.load %arg10[%327, %c0_106] : memref<16x128xf32, #tpu.memory_space<vmem>>, vector<2x128xf32>
      %cst_107 = arith.constant dense<0.000000e+00> : vector<2x128xf32>
      %329 = tpu.matmul %323, %292, %cst_107 {dimension_numbers = #tpu.dot_dimension_numbers<[1], [0], [0], [1], [0, 0, 1, 1], [], []>} : vector<2x32xf32>, vector<32x128xf32>, vector<2x128xf32> -> vector<2x128xf32>
      %330 = arith.addf %328, %329 : vector<2x128xf32>
      %331 = vector.extract_strided_slice %330 {offsets = [0, 0], sizes = [2, 32], strides = [1, 1]} : vector<2x128xf32> to vector<2x32xf32>
      %332 = arith.negf %331 : vector<2x32xf32>
      %333 = math.exp %332 : vector<2x32xf32>
      %cst_108 = arith.constant 1.000000e+00 : f32
      %334 = vector.broadcast %cst_108 : f32 to vector<2x32xf32>
      %335 = arith.addf %334, %333 : vector<2x32xf32>
      %336 = arith.divf %334, %335 : vector<2x32xf32>
      %337 = vector.extract_strided_slice %330 {offsets = [0, 32], sizes = [2, 32], strides = [1, 1]} : vector<2x128xf32> to vector<2x32xf32>
      %338 = arith.negf %337 : vector<2x32xf32>
      %339 = math.exp %338 : vector<2x32xf32>
      %cst_109 = arith.constant 1.000000e+00 : f32
      %340 = vector.broadcast %cst_109 : f32 to vector<2x32xf32>
      %341 = arith.addf %340, %339 : vector<2x32xf32>
      %342 = arith.divf %340, %341 : vector<2x32xf32>
      %343 = vector.extract_strided_slice %330 {offsets = [0, 64], sizes = [2, 32], strides = [1, 1]} : vector<2x128xf32> to vector<2x32xf32>
      %344 = math.tanh %343 : vector<2x32xf32>
      %345 = vector.extract_strided_slice %330 {offsets = [0, 96], sizes = [2, 32], strides = [1, 1]} : vector<2x128xf32> to vector<2x32xf32>
      %346 = arith.negf %345 : vector<2x32xf32>
      %347 = math.exp %346 : vector<2x32xf32>
      %cst_110 = arith.constant 1.000000e+00 : f32
      %348 = vector.broadcast %cst_110 : f32 to vector<2x32xf32>
      %349 = arith.addf %348, %347 : vector<2x32xf32>
      %350 = arith.divf %348, %349 : vector<2x32xf32>
      %351 = arith.mulf %342, %321 : vector<2x32xf32>
      %352 = arith.mulf %336, %344 : vector<2x32xf32>
      %353 = arith.addf %351, %352 : vector<2x32xf32>
      %354 = math.tanh %353 : vector<2x32xf32>
      %355 = arith.mulf %350, %354 : vector<2x32xf32>
      %356 = arith.index_cast %326 : i32 to index
      %c0_111 = arith.constant 0 : index
      %357 = vector.load %arg9[%356, %c0_111] : memref<16x32xf32, #tpu.memory_space<vmem>>, vector<2x32xf32>
      tpu.vector_store %arg9[%356, %c0_111], %355 {strides = array<i32>} : memref<16x32xf32, #tpu.memory_space<vmem>>, vector<2x32xf32>,
      %c2_i32_112 = arith.constant 2 : i32
      %c2_i32_113 = arith.constant 2 : i32
      %358 = arith.muli %c2_i32_112, %c2_i32_113 : i32
      %359 = arith.index_cast %358 : i32 to index
      %c0_114 = arith.constant 0 : index
      %360 = vector.load %arg10[%359, %c0_114] : memref<16x128xf32, #tpu.memory_space<vmem>>, vector<2x128xf32>
      %cst_115 = arith.constant dense<0.000000e+00> : vector<2x128xf32>
      %361 = tpu.matmul %355, %292, %cst_115 {dimension_numbers = #tpu.dot_dimension_numbers<[1], [0], [0], [1], [0, 0, 1, 1], [], []>} : vector<2x32xf32>, vector<32x128xf32>, vector<2x128xf32> -> vector<2x128xf32>
      %362 = arith.addf %360, %361 : vector<2x128xf32>
      %363 = vector.extract_strided_slice %362 {offsets = [0, 0], sizes = [2, 32], strides = [1, 1]} : vector<2x128xf32> to vector<2x32xf32>
      %364 = arith.negf %363 : vector<2x32xf32>
      %365 = math.exp %364 : vector<2x32xf32>
      %cst_116 = arith.constant 1.000000e+00 : f32
      %366 = vector.broadcast %cst_116 : f32 to vector<2x32xf32>
      %367 = arith.addf %366, %365 : vector<2x32xf32>
      %368 = arith.divf %366, %367 : vector<2x32xf32>
      %369 = vector.extract_strided_slice %362 {offsets = [0, 32], sizes = [2, 32], strides = [1, 1]} : vector<2x128xf32> to vector<2x32xf32>
      %370 = arith.negf %369 : vector<2x32xf32>
      %371 = math.exp %370 : vector<2x32xf32>
      %cst_117 = arith.constant 1.000000e+00 : f32
      %372 = vector.broadcast %cst_117 : f32 to vector<2x32xf32>
      %373 = arith.addf %372, %371 : vector<2x32xf32>
      %374 = arith.divf %372, %373 : vector<2x32xf32>
      %375 = vector.extract_strided_slice %362 {offsets = [0, 64], sizes = [2, 32], strides = [1, 1]} : vector<2x128xf32> to vector<2x32xf32>
      %376 = math.tanh %375 : vector<2x32xf32>
      %377 = vector.extract_strided_slice %362 {offsets = [0, 96], sizes = [2, 32], strides = [1, 1]} : vector<2x128xf32> to vector<2x32xf32>
      %378 = arith.negf %377 : vector<2x32xf32>
      %379 = math.exp %378 : vector<2x32xf32>
      %cst_118 = arith.constant 1.000000e+00 : f32
      %380 = vector.broadcast %cst_118 : f32 to vector<2x32xf32>
      %381 = arith.addf %380, %379 : vector<2x32xf32>
      %382 = arith.divf %380, %381 : vector<2x32xf32>
      %383 = arith.mulf %374, %353 : vector<2x32xf32>
      %384 = arith.mulf %368, %376 : vector<2x32xf32>
      %385 = arith.addf %383, %384 : vector<2x32xf32>
      %386 = math.tanh %385 : vector<2x32xf32>
      %387 = arith.mulf %382, %386 : vector<2x32xf32>
      %388 = arith.index_cast %358 : i32 to index
      %c0_119 = arith.constant 0 : index
      %389 = vector.load %arg9[%388, %c0_119] : memref<16x32xf32, #tpu.memory_space<vmem>>, vector<2x32xf32>
      tpu.vector_store %arg9[%388, %c0_119], %387 {strides = array<i32>} : memref<16x32xf32, #tpu.memory_space<vmem>>, vector<2x32xf32>,
      %c3_i32_120 = arith.constant 3 : i32
      %c2_i32_121 = arith.constant 2 : i32
      %390 = arith.muli %c3_i32_120, %c2_i32_121 : i32
      %391 = arith.index_cast %390 : i32 to index
      %c0_122 = arith.constant 0 : index
      %392 = vector.load %arg10[%391, %c0_122] : memref<16x128xf32, #tpu.memory_space<vmem>>, vector<2x128xf32>
      %cst_123 = arith.constant dense<0.000000e+00> : vector<2x128xf32>
      %393 = tpu.matmul %387, %292, %cst_123 {dimension_numbers = #tpu.dot_dimension_numbers<[1], [0], [0], [1], [0, 0, 1, 1], [], []>} : vector<2x32xf32>, vector<32x128xf32>, vector<2x128xf32> -> vector<2x128xf32>
      %394 = arith.addf %392, %393 : vector<2x128xf32>
      %395 = vector.extract_strided_slice %394 {offsets = [0, 0], sizes = [2, 32], strides = [1, 1]} : vector<2x128xf32> to vector<2x32xf32>
      %396 = arith.negf %395 : vector<2x32xf32>
      %397 = math.exp %396 : vector<2x32xf32>
      %cst_124 = arith.constant 1.000000e+00 : f32
      %398 = vector.broadcast %cst_124 : f32 to vector<2x32xf32>
      %399 = arith.addf %398, %397 : vector<2x32xf32>
      %400 = arith.divf %398, %399 : vector<2x32xf32>
      %401 = vector.extract_strided_slice %394 {offsets = [0, 32], sizes = [2, 32], strides = [1, 1]} : vector<2x128xf32> to vector<2x32xf32>
      %402 = arith.negf %401 : vector<2x32xf32>
      %403 = math.exp %402 : vector<2x32xf32>
      %cst_125 = arith.constant 1.000000e+00 : f32
      %404 = vector.broadcast %cst_125 : f32 to vector<2x32xf32>
      %405 = arith.addf %404, %403 : vector<2x32xf32>
      %406 = arith.divf %404, %405 : vector<2x32xf32>
      %407 = vector.extract_strided_slice %394 {offsets = [0, 64], sizes = [2, 32], strides = [1, 1]} : vector<2x128xf32> to vector<2x32xf32>
      %408 = math.tanh %407 : vector<2x32xf32>
      %409 = vector.extract_strided_slice %394 {offsets = [0, 96], sizes = [2, 32], strides = [1, 1]} : vector<2x128xf32> to vector<2x32xf32>
      %410 = arith.negf %409 : vector<2x32xf32>
      %411 = math.exp %410 : vector<2x32xf32>
      %cst_126 = arith.constant 1.000000e+00 : f32
      %412 = vector.broadcast %cst_126 : f32 to vector<2x32xf32>
      %413 = arith.addf %412, %411 : vector<2x32xf32>
      %414 = arith.divf %412, %413 : vector<2x32xf32>
      %415 = arith.mulf %406, %385 : vector<2x32xf32>
      %416 = arith.mulf %400, %408 : vector<2x32xf32>
      %417 = arith.addf %415, %416 : vector<2x32xf32>
      %418 = math.tanh %417 : vector<2x32xf32>
      %419 = arith.mulf %414, %418 : vector<2x32xf32>
      %420 = arith.index_cast %390 : i32 to index
      %c0_127 = arith.constant 0 : index
      %421 = vector.load %arg9[%420, %c0_127] : memref<16x32xf32, #tpu.memory_space<vmem>>, vector<2x32xf32>
      tpu.vector_store %arg9[%420, %c0_127], %419 {strides = array<i32>} : memref<16x32xf32, #tpu.memory_space<vmem>>, vector<2x32xf32>,
      %c4_i32_128 = arith.constant 4 : i32
      %c2_i32_129 = arith.constant 2 : i32
      %422 = arith.muli %c4_i32_128, %c2_i32_129 : i32
      %423 = arith.index_cast %422 : i32 to index
      %c0_130 = arith.constant 0 : index
      %424 = vector.load %arg10[%423, %c0_130] : memref<16x128xf32, #tpu.memory_space<vmem>>, vector<2x128xf32>
      %cst_131 = arith.constant dense<0.000000e+00> : vector<2x128xf32>
      %425 = tpu.matmul %419, %292, %cst_131 {dimension_numbers = #tpu.dot_dimension_numbers<[1], [0], [0], [1], [0, 0, 1, 1], [], []>} : vector<2x32xf32>, vector<32x128xf32>, vector<2x128xf32> -> vector<2x128xf32>
      %426 = arith.addf %424, %425 : vector<2x128xf32>
      %427 = vector.extract_strided_slice %426 {offsets = [0, 0], sizes = [2, 32], strides = [1, 1]} : vector<2x128xf32> to vector<2x32xf32>
      %428 = arith.negf %427 : vector<2x32xf32>
      %429 = math.exp %428 : vector<2x32xf32>
      %cst_132 = arith.constant 1.000000e+00 : f32
      %430 = vector.broadcast %cst_132 : f32 to vector<2x32xf32>
      %431 = arith.addf %430, %429 : vector<2x32xf32>
      %432 = arith.divf %430, %431 : vector<2x32xf32>
      %433 = vector.extract_strided_slice %426 {offsets = [0, 32], sizes = [2, 32], strides = [1, 1]} : vector<2x128xf32> to vector<2x32xf32>
      %434 = arith.negf %433 : vector<2x32xf32>
      %435 = math.exp %434 : vector<2x32xf32>
      %cst_133 = arith.constant 1.000000e+00 : f32
      %436 = vector.broadcast %cst_133 : f32 to vector<2x32xf32>
      %437 = arith.addf %436, %435 : vector<2x32xf32>
      %438 = arith.divf %436, %437 : vector<2x32xf32>
      %439 = vector.extract_strided_slice %426 {offsets = [0, 64], sizes = [2, 32], strides = [1, 1]} : vector<2x128xf32> to vector<2x32xf32>
      %440 = math.tanh %439 : vector<2x32xf32>
      %441 = vector.extract_strided_slice %426 {offsets = [0, 96], sizes = [2, 32], strides = [1, 1]} : vector<2x128xf32> to vector<2x32xf32>
      %442 = arith.negf %441 : vector<2x32xf32>
      %443 = math.exp %442 : vector<2x32xf32>
      %cst_134 = arith.constant 1.000000e+00 : f32
      %444 = vector.broadcast %cst_134 : f32 to vector<2x32xf32>
      %445 = arith.addf %444, %443 : vector<2x32xf32>
      %446 = arith.divf %444, %445 : vector<2x32xf32>
      %447 = arith.mulf %438, %417 : vector<2x32xf32>
      %448 = arith.mulf %432, %440 : vector<2x32xf32>
      %449 = arith.addf %447, %448 : vector<2x32xf32>
      %450 = math.tanh %449 : vector<2x32xf32>
      %451 = arith.mulf %446, %450 : vector<2x32xf32>
      %452 = arith.index_cast %422 : i32 to index
      %c0_135 = arith.constant 0 : index
      %453 = vector.load %arg9[%452, %c0_135] : memref<16x32xf32, #tpu.memory_space<vmem>>, vector<2x32xf32>
      tpu.vector_store %arg9[%452, %c0_135], %451 {strides = array<i32>} : memref<16x32xf32, #tpu.memory_space<vmem>>, vector<2x32xf32>,
      %c5_i32_136 = arith.constant 5 : i32
      %c2_i32_137 = arith.constant 2 : i32
      %454 = arith.muli %c5_i32_136, %c2_i32_137 : i32
      %455 = arith.index_cast %454 : i32 to index
      %c0_138 = arith.constant 0 : index
      %456 = vector.load %arg10[%455, %c0_138] : memref<16x128xf32, #tpu.memory_space<vmem>>, vector<2x128xf32>
      %cst_139 = arith.constant dense<0.000000e+00> : vector<2x128xf32>
      %457 = tpu.matmul %451, %292, %cst_139 {dimension_numbers = #tpu.dot_dimension_numbers<[1], [0], [0], [1], [0, 0, 1, 1], [], []>} : vector<2x32xf32>, vector<32x128xf32>, vector<2x128xf32> -> vector<2x128xf32>
      %458 = arith.addf %456, %457 : vector<2x128xf32>
      %459 = vector.extract_strided_slice %458 {offsets = [0, 0], sizes = [2, 32], strides = [1, 1]} : vector<2x128xf32> to vector<2x32xf32>
      %460 = arith.negf %459 : vector<2x32xf32>
      %461 = math.exp %460 : vector<2x32xf32>
      %cst_140 = arith.constant 1.000000e+00 : f32
      %462 = vector.broadcast %cst_140 : f32 to vector<2x32xf32>
      %463 = arith.addf %462, %461 : vector<2x32xf32>
      %464 = arith.divf %462, %463 : vector<2x32xf32>
      %465 = vector.extract_strided_slice %458 {offsets = [0, 32], sizes = [2, 32], strides = [1, 1]} : vector<2x128xf32> to vector<2x32xf32>
      %466 = arith.negf %465 : vector<2x32xf32>
      %467 = math.exp %466 : vector<2x32xf32>
      %cst_141 = arith.constant 1.000000e+00 : f32
      %468 = vector.broadcast %cst_141 : f32 to vector<2x32xf32>
      %469 = arith.addf %468, %467 : vector<2x32xf32>
      %470 = arith.divf %468, %469 : vector<2x32xf32>
      %471 = vector.extract_strided_slice %458 {offsets = [0, 64], sizes = [2, 32], strides = [1, 1]} : vector<2x128xf32> to vector<2x32xf32>
      %472 = math.tanh %471 : vector<2x32xf32>
      %473 = vector.extract_strided_slice %458 {offsets = [0, 96], sizes = [2, 32], strides = [1, 1]} : vector<2x128xf32> to vector<2x32xf32>
      %474 = arith.negf %473 : vector<2x32xf32>
      %475 = math.exp %474 : vector<2x32xf32>
      %cst_142 = arith.constant 1.000000e+00 : f32
      %476 = vector.broadcast %cst_142 : f32 to vector<2x32xf32>
      %477 = arith.addf %476, %475 : vector<2x32xf32>
      %478 = arith.divf %476, %477 : vector<2x32xf32>
      %479 = arith.mulf %470, %449 : vector<2x32xf32>
      %480 = arith.mulf %464, %472 : vector<2x32xf32>
      %481 = arith.addf %479, %480 : vector<2x32xf32>
      %482 = math.tanh %481 : vector<2x32xf32>
      %483 = arith.mulf %478, %482 : vector<2x32xf32>
      %484 = arith.index_cast %454 : i32 to index
      %c0_143 = arith.constant 0 : index
      %485 = vector.load %arg9[%484, %c0_143] : memref<16x32xf32, #tpu.memory_space<vmem>>, vector<2x32xf32>
      tpu.vector_store %arg9[%484, %c0_143], %483 {strides = array<i32>} : memref<16x32xf32, #tpu.memory_space<vmem>>, vector<2x32xf32>,
      %c6_i32_144 = arith.constant 6 : i32
      %c2_i32_145 = arith.constant 2 : i32
      %486 = arith.muli %c6_i32_144, %c2_i32_145 : i32
      %487 = arith.index_cast %486 : i32 to index
      %c0_146 = arith.constant 0 : index
      %488 = vector.load %arg10[%487, %c0_146] : memref<16x128xf32, #tpu.memory_space<vmem>>, vector<2x128xf32>
      %cst_147 = arith.constant dense<0.000000e+00> : vector<2x128xf32>
      %489 = tpu.matmul %483, %292, %cst_147 {dimension_numbers = #tpu.dot_dimension_numbers<[1], [0], [0], [1], [0, 0, 1, 1], [], []>} : vector<2x32xf32>, vector<32x128xf32>, vector<2x128xf32> -> vector<2x128xf32>
      %490 = arith.addf %488, %489 : vector<2x128xf32>
      %491 = vector.extract_strided_slice %490 {offsets = [0, 0], sizes = [2, 32], strides = [1, 1]} : vector<2x128xf32> to vector<2x32xf32>
      %492 = arith.negf %491 : vector<2x32xf32>
      %493 = math.exp %492 : vector<2x32xf32>
      %cst_148 = arith.constant 1.000000e+00 : f32
      %494 = vector.broadcast %cst_148 : f32 to vector<2x32xf32>
      %495 = arith.addf %494, %493 : vector<2x32xf32>
      %496 = arith.divf %494, %495 : vector<2x32xf32>
      %497 = vector.extract_strided_slice %490 {offsets = [0, 32], sizes = [2, 32], strides = [1, 1]} : vector<2x128xf32> to vector<2x32xf32>
      %498 = arith.negf %497 : vector<2x32xf32>
      %499 = math.exp %498 : vector<2x32xf32>
      %cst_149 = arith.constant 1.000000e+00 : f32
      %500 = vector.broadcast %cst_149 : f32 to vector<2x32xf32>
      %501 = arith.addf %500, %499 : vector<2x32xf32>
      %502 = arith.divf %500, %501 : vector<2x32xf32>
      %503 = vector.extract_strided_slice %490 {offsets = [0, 64], sizes = [2, 32], strides = [1, 1]} : vector<2x128xf32> to vector<2x32xf32>
      %504 = math.tanh %503 : vector<2x32xf32>
      %505 = vector.extract_strided_slice %490 {offsets = [0, 96], sizes = [2, 32], strides = [1, 1]} : vector<2x128xf32> to vector<2x32xf32>
      %506 = arith.negf %505 : vector<2x32xf32>
      %507 = math.exp %506 : vector<2x32xf32>
      %cst_150 = arith.constant 1.000000e+00 : f32
      %508 = vector.broadcast %cst_150 : f32 to vector<2x32xf32>
      %509 = arith.addf %508, %507 : vector<2x32xf32>
      %510 = arith.divf %508, %509 : vector<2x32xf32>
      %511 = arith.mulf %502, %481 : vector<2x32xf32>
      %512 = arith.mulf %496, %504 : vector<2x32xf32>
      %513 = arith.addf %511, %512 : vector<2x32xf32>
      %514 = math.tanh %513 : vector<2x32xf32>
      %515 = arith.mulf %510, %514 : vector<2x32xf32>
      %516 = arith.index_cast %486 : i32 to index
      %c0_151 = arith.constant 0 : index
      %517 = vector.load %arg9[%516, %c0_151] : memref<16x32xf32, #tpu.memory_space<vmem>>, vector<2x32xf32>
      tpu.vector_store %arg9[%516, %c0_151], %515 {strides = array<i32>} : memref<16x32xf32, #tpu.memory_space<vmem>>, vector<2x32xf32>,
      %c7_i32_152 = arith.constant 7 : i32
      %c2_i32_153 = arith.constant 2 : i32
      %518 = arith.muli %c7_i32_152, %c2_i32_153 : i32
      %519 = arith.index_cast %518 : i32 to index
      %c0_154 = arith.constant 0 : index
      %520 = vector.load %arg10[%519, %c0_154] : memref<16x128xf32, #tpu.memory_space<vmem>>, vector<2x128xf32>
      %cst_155 = arith.constant dense<0.000000e+00> : vector<2x128xf32>
      %521 = tpu.matmul %515, %292, %cst_155 {dimension_numbers = #tpu.dot_dimension_numbers<[1], [0], [0], [1], [0, 0, 1, 1], [], []>} : vector<2x32xf32>, vector<32x128xf32>, vector<2x128xf32> -> vector<2x128xf32>
      %522 = arith.addf %520, %521 : vector<2x128xf32>
      %523 = vector.extract_strided_slice %522 {offsets = [0, 0], sizes = [2, 32], strides = [1, 1]} : vector<2x128xf32> to vector<2x32xf32>
      %524 = arith.negf %523 : vector<2x32xf32>
      %525 = math.exp %524 : vector<2x32xf32>
      %cst_156 = arith.constant 1.000000e+00 : f32
      %526 = vector.broadcast %cst_156 : f32 to vector<2x32xf32>
      %527 = arith.addf %526, %525 : vector<2x32xf32>
      %528 = arith.divf %526, %527 : vector<2x32xf32>
      %529 = vector.extract_strided_slice %522 {offsets = [0, 32], sizes = [2, 32], strides = [1, 1]} : vector<2x128xf32> to vector<2x32xf32>
      %530 = arith.negf %529 : vector<2x32xf32>
      %531 = math.exp %530 : vector<2x32xf32>
      %cst_157 = arith.constant 1.000000e+00 : f32
      %532 = vector.broadcast %cst_157 : f32 to vector<2x32xf32>
      %533 = arith.addf %532, %531 : vector<2x32xf32>
      %534 = arith.divf %532, %533 : vector<2x32xf32>
      %535 = vector.extract_strided_slice %522 {offsets = [0, 64], sizes = [2, 32], strides = [1, 1]} : vector<2x128xf32> to vector<2x32xf32>
      %536 = math.tanh %535 : vector<2x32xf32>
      %537 = vector.extract_strided_slice %522 {offsets = [0, 96], sizes = [2, 32], strides = [1, 1]} : vector<2x128xf32> to vector<2x32xf32>
      %538 = arith.negf %537 : vector<2x32xf32>
      %539 = math.exp %538 : vector<2x32xf32>
      %cst_158 = arith.constant 1.000000e+00 : f32
      %540 = vector.broadcast %cst_158 : f32 to vector<2x32xf32>
      %541 = arith.addf %540, %539 : vector<2x32xf32>
      %542 = arith.divf %540, %541 : vector<2x32xf32>
      %543 = arith.mulf %534, %513 : vector<2x32xf32>
      %544 = arith.mulf %528, %536 : vector<2x32xf32>
      %545 = arith.addf %543, %544 : vector<2x32xf32>
      %546 = math.tanh %545 : vector<2x32xf32>
      %547 = arith.mulf %542, %546 : vector<2x32xf32>
      %548 = arith.index_cast %518 : i32 to index
      %c0_159 = arith.constant 0 : index
      %549 = vector.load %arg9[%548, %c0_159] : memref<16x32xf32, #tpu.memory_space<vmem>>, vector<2x32xf32>
      tpu.vector_store %arg9[%548, %c0_159], %547 {strides = array<i32>} : memref<16x32xf32, #tpu.memory_space<vmem>>, vector<2x32xf32>,
      %c8_i32_160 = arith.constant 8 : i32
    }
    %c5_i32_71 = arith.constant 5 : i32
    %c14 = arith.constant 14 : index
    %c0_72 = arith.constant 0 : index
    %268 = vector.load %arg9[%c14, %c0_72] : memref<16x32xf32, #tpu.memory_space<vmem>>, vector<2x32xf32>
    %c0_73 = arith.constant 0 : index
    %c0_74 = arith.constant 0 : index
    %269 = vector.load %arg5[%c0_73, %c0_74] : memref<2x32xf32, #tpu.memory_space<vmem>>, vector<2x32xf32>
    %270 = arith.addf %268, %269 : vector<2x32xf32>
    %c0_75 = arith.constant 0 : index
    %c0_76 = arith.constant 0 : index
    %271 = vector.load %arg6[%c0_75, %c0_76] : memref<32x4xf32, #tpu.memory_space<vmem>>, vector<32x4xf32>
    %cst_77 = arith.constant dense<0.000000e+00> : vector<2x4xf32>
    %272 = tpu.matmul %270, %271, %cst_77 {dimension_numbers = #tpu.dot_dimension_numbers<[1], [0], [0], [1], [0, 0, 1, 1], [], []>} : vector<2x32xf32>, vector<32x4xf32>, vector<2x4xf32> -> vector<2x4xf32>
    %c0_78 = arith.constant 0 : index
    %c0_79 = arith.constant 0 : index
    %273 = vector.load %arg7[%c0_78, %c0_79] : memref<1x4xf32, #tpu.memory_space<vmem>>, vector<1x4xf32>
    %274 = vector.broadcast %273 : vector<1x4xf32> to vector<2x4xf32>
    %275 = arith.addf %272, %274 : vector<2x4xf32>
    %c0_80 = arith.constant 0 : index
    %c0_81 = arith.constant 0 : index
    %276 = vector.load %arg8[%c0_80, %c0_81] : memref<2x4xf32, #tpu.memory_space<vmem>>, vector<2x4xf32>
    tpu.vector_store %arg8[%c0_80, %c0_81], %275 {strides = array<i32>} : memref<2x4xf32, #tpu.memory_space<vmem>>, vector<2x4xf32>,
    return
  }
}

</mosaic_0001>

<llo_original>
// kernel: residual_lstm_forward.1
$region0: #{residual_lstm_forward.1}
  #allocation0 [shape = 'u32[]', space=smem, size = 0x4, offset = 0x4, fixed_abs, tag = 'smem constant byte address 0x4 - core index']
  #allocation1 [shape = 'u32[144,128]{1,0:T(1,128)}', space=vmem, size = 0x12000, scoped, tag = 'internal scratch']
  #allocation2 [shape = 'f32[16,32]{1,0:T(8,128)}', space=vmem, size = 0x2000, scoped, tag = 'scratch operand']
  #allocation3 [shape = 'f32[16,128]{1,0:T(8,128)}', space=vmem, size = 0x2000, scoped, tag = 'scratch operand']
  %s0 = inlined_call_operand.vmem [shape: f32[16,8], index: 0, kind: input, shape index: {}]
  %s1 = inlined_call_operand.vmem [shape: f32[8,128], index: 1, kind: input, shape index: {}]
  %s2 = inlined_call_operand.hbm [shape: f32[5,32,128], index: 2, kind: input, shape index: {}]
  %s3 = inlined_call_operand.hbm [shape: f32[6,32,128], index: 3, kind: input, shape index: {}]
  %s4 = inlined_call_operand.vmem [shape: f32[6,1,128], index: 4, kind: input, shape index: {}]
  %s5 = inlined_call_operand.vmem [shape: f32[2,32], index: 5, kind: input, shape index: {}]
  %s6 = inlined_call_operand.vmem [shape: f32[32,4], index: 6, kind: input, shape index: {}]
  %s7 = inlined_call_operand.vmem [shape: f32[1,4], index: 7, kind: input, shape index: {}]
  %s8 = inlined_call_operand.hbm [shape: f32[2,4], index: 8, kind: output, shape index: {}]
  %s9 = sld [smem:[#allocation0]]
  $region57: #{residual_lstm_forward.1} parent=0
    _
  %s11 = ssub.s32 1, %s9
  %s12 = scalar_select 0, %s11, %s9
  $region1: #{residual_lstm_forward.1} parent=0
    #allocation4 [shape = 'u8[81920]{0}', space=vmem, size = 0x14000, scoped, tag = 'input window, operand 2, single buffered']
    #allocation5 [shape = 's32[1]{0}', space=sflag, size = 0x4, scoped, tag = 'scoped memory for residual_lstm_forward.1']
    #allocation6 [shape = 's32[1]{0}', space=sflag, size = 0x4, scoped, tag = 'scoped memory for residual_lstm_forward.1']
    #allocation7 [shape = 'u8[98304]{0}', space=vmem, size = 0x18000, scoped, tag = 'input window, operand 3, single buffered']
    #allocation8 [shape = 's32[1]{0}', space=sflag, size = 0x4, scoped, tag = 'scoped memory for residual_lstm_forward.1']
    #allocation9 [shape = 'u8[1024]{0}', space=vmem, size = 0x400, scoped, tag = 'output window, operand 0, single buffered']
    %13 = vsyncpa [#allocation5], 0
    %14 = vsyncpa [#allocation8], 0
    %15 = vsyncpa [#allocation6], 0
    // Predicated region
    $region2: #{residual_lstm_forward.1} parent=1 // pred_check
      _
    $region3: #{residual_lstm_forward.1} parent=1 // pred_check_branch
      %17 = sbr.rel (0) target = $region5
    $region4: #{residual_lstm_forward.1} parent=1 // pred_region
      _
    $region5: #{residual_lstm_forward.1} parent=1 // pred_fallthru
      _
    // Predicated region
    $region6: #{residual_lstm_forward.1} parent=1 // pred_check
      _
    $region7: #{residual_lstm_forward.1} parent=1 // pred_check_branch
      %19 = sbr.rel (0) target = $region9
    $region8: #{residual_lstm_forward.1} parent=1 // pred_region
      _
    $region9: #{residual_lstm_forward.1} parent=1 // pred_fallthru
      _
    // Predicated region
    $region10: #{residual_lstm_forward.1} parent=1 // pred_check
      _
    $region11: #{residual_lstm_forward.1} parent=1 // pred_check_branch
      %21 = sbr.rel (0) target = $region13
    $region12: #{residual_lstm_forward.1} parent=1 // pred_region
      %s23 = ssub.s32 2560, 2560
      %24 = vsyncadd [#allocation5], %s23
      %s25 = sshll.u32 [#allocation4], 4
      %s26 = int_to_ptr.vmem [resolvable:$true] %s25
      %31 = dma.hbm_to_vmem [thread:$0]  %s2, 2560, %s26, [#allocation5], 128, 128, 8
    $region13: #{residual_lstm_forward.1} parent=1 // pred_fallthru
      _
    // Predicated region
    $region14: #{residual_lstm_forward.1} parent=1 // pred_check
      _
    $region15: #{residual_lstm_forward.1} parent=1 // pred_check_branch
      %33 = sbr.rel (0) target = $region17
    $region16: #{residual_lstm_forward.1} parent=1 // pred_region
      %s35 = ssub.s32 3072, 3072
      %36 = vsyncadd [#allocation8], %s35
      %s37 = sshll.u32 [#allocation7], 4
      %s38 = int_to_ptr.vmem [resolvable:$true] %s37
      %43 = dma.hbm_to_vmem [thread:$0]  %s3, 3072, %s38, [#allocation8], 128, 128, 8
    $region17: #{residual_lstm_forward.1} parent=1 // pred_fallthru
      _
    // Predicated region
    $region18: #{residual_lstm_forward.1} parent=1 // pred_check
      _
    $region19: #{residual_lstm_forward.1} parent=1 // pred_check_branch
      %45 = sbr.rel (0) target = $region21
    $region20: #{residual_lstm_forward.1} parent=1 // pred_region
      _
    $region21: #{residual_lstm_forward.1} parent=1 // pred_fallthru
      _
    // Predicated region
    $region22: #{residual_lstm_forward.1} parent=1 // pred_check
      _
    $region23: #{residual_lstm_forward.1} parent=1 // pred_check_branch
      %47 = sbr.rel (0) target = $region25
    $region24: #{residual_lstm_forward.1} parent=1 // pred_region
      _
    $region25: #{residual_lstm_forward.1} parent=1 // pred_fallthru
      _
    // Predicated region
    $region26: #{residual_lstm_forward.1} parent=1 // pred_check
      _
    $region27: #{residual_lstm_forward.1} parent=1 // pred_check_branch
      %49 = sbr.rel (0) target = $region29
    $region28: #{residual_lstm_forward.1} parent=1 // pred_region
      _
    $region29: #{residual_lstm_forward.1} parent=1 // pred_fallthru
      _
    // Predicated region
    $region30: #{residual_lstm_forward.1} parent=1 // pred_check
      _
    $region31: #{residual_lstm_forward.1} parent=1 // pred_check_branch
      %51 = sbr.rel (0) target = $region33
    $region32: #{residual_lstm_forward.1} parent=1 // pred_region
      _
    $region33: #{residual_lstm_forward.1} parent=1 // pred_fallthru
      _
    // Predicated region
    $region34: #{residual_lstm_forward.1} parent=1 // pred_check
      _
    $region35: #{residual_lstm_forward.1} parent=1 // pred_check_branch
      %53 = sbr.rel (0) target = $region37
    $region36: #{residual_lstm_forward.1} parent=1 // pred_region
      %54 = dma.done [#allocation5], 2560
    $region37: #{residual_lstm_forward.1} parent=1 // pred_fallthru
      _
    // Predicated region
    $region38: #{residual_lstm_forward.1} parent=1 // pred_check
      _
    $region39: #{residual_lstm_forward.1} parent=1 // pred_check_branch
      %56 = sbr.rel (0) target = $region41
    $region40: #{residual_lstm_forward.1} parent=1 // pred_region
      %57 = dma.done [#allocation8], 3072
    $region41: #{residual_lstm_forward.1} parent=1 // pred_fallthru
      _
    %v58 = vld [vmem:[%s0] sm:$0xff]
    %v59 = vld [vmem:[%s0 + $0x8] sm:$0xff]
    %v60 = vld [vmem:[%s1] sm:$0xff]
    %v61 = vld [vmem:[%s4] sm:$0x1]
    %v63 = vlaneseq
    %v64 = vshrl.u32 %v63, 7
    %v65 = vsub.s32 0, %v64
    %v66 = vrot.slane %v61, %v65
    %vm68 = vcmask 64512
    %v70 = vsel %vm68, %v58, 0
    %v73 = vsel %vm68, %v59, 0
    %75 = vmatprep.subr.mxu0 0.0
    %76 = vmatpush1.msra.mxu0 %v60
    %77 = vmatprep.subr.mxu0 0.0
    %78 = vmatpush1.msra.mxu0 0.0
    %79 = vmatprep.subr.mxu0 0.0
    %80 = vmatpush1.msra.mxu0 0.0
    %81 = vmatprep.subr.mxu0 0.0
    %82 = vmatpush1.msra.mxu0 0.0
    %83 = vmatprep.subr.mxu0 0.0
    %84 = vmatpush1.msra.mxu0 0.0
    %85 = vmatprep.subr.mxu0 0.0
    %86 = vmatpush1.msra.mxu0 0.0
    %87 = vmatprep.subr.mxu0 0.0
    %88 = vmatpush1.msra.mxu0 0.0
    %89 = vmatprep.subr.mxu0 0.0
    %90 = vmatpush1.msra.mxu0 0.0
    %91 = vmatprep.subr.mxu0 0.0
    %92 = vmatpush1.msra.mxu0 0.0
    %93 = vmatprep.subr.mxu0 0.0
    %94 = vmatpush1.msra.mxu0 0.0
    %95 = vmatprep.subr.mxu0 0.0
    %96 = vmatpush1.msra.mxu0 0.0
    %97 = vmatprep.subr.mxu0 0.0
    %98 = vmatpush1.msra.mxu0 0.0
    %99 = vmatprep.subr.mxu0 0.0
    %100 = vmatpush1.msra.mxu0 0.0
    %101 = vmatprep.subr.mxu0 0.0
    %102 = vmatpush1.msra.mxu0 0.0
    %103 = vmatprep.subr.mxu0 0.0
    %104 = vmatpush1.msra.mxu0 0.0
    %105 = vmatprep.subr.mxu0 0.0
    %106 = vmatpush1.msra.mxu0 0.0
    %107 = vmatprep.subr.mxu0 0.0
    %108 = vmatpush1.msra.mxu0 0.0
    %109 = vmatprep.subr.mxu0 0.0
    %110 = vmatpush1.msra.mxu0 0.0
    %111 = vmatprep.subr.mxu0 0.0
    %112 = vmatpush1.msra.mxu0 0.0
    %113 = vmatprep.subr.mxu0 0.0
    %114 = vmatpush1.msra.mxu0 0.0
    %115 = vmatprep.subr.mxu0 0.0
    %116 = vmatpush1.msra.mxu0 0.0
    %117 = vmatprep.subr.mxu0 0.0
    %118 = vmatpush1.msra.mxu0 0.0
    %119 = vmatprep.subr.mxu0 0.0
    %120 = vmatpush1.msra.mxu0 0.0
    %121 = vmatprep.subr.mxu0 0.0
    %122 = vmatpush1.msra.mxu0 0.0
    %123 = vmatprep.subr.mxu0 0.0
    %124 = vmatpush1.msra.mxu0 0.0
    %125 = vmatprep.subr.mxu0 0.0
    %126 = vmatpush1.msra.mxu0 0.0
    %127 = vmatprep.subr.mxu0 0.0
    %128 = vmatpush1.msra.mxu0 0.0
    %129 = vmatprep.subr.mxu0 0.0
    %130 = vmatpush1.msra.mxu0 0.0
    %131 = vmatprep.subr.mxu0 0.0
    %132 = vmatpush1.msra.mxu0 0.0
    %133 = vmatprep.subr.mxu0 0.0
    %134 = vmatpush1.msra.mxu0 0.0
    %135 = vmatprep.subr.mxu0 0.0
    %136 = vmatpush1.msra.mxu0 0.0
    %137 = vmatprep.subr.mxu0 0.0
    %138 = vmatpush1.msra.mxu0 0.0
    %139 = vmatprep.mubr.f32.mxu0 0.0
    %140 = vmatmul.mubr.f32.gmra.mrb[0].mxu0 %v70
    %v141 = vpop.f32.mrb[0].mxu0
    %v142 = vadd.f32 %v66, %v141
    %v143 = vpop.f32.mrb[0].mxu0
    %144 = vmatprep.mubr.f32.mxu0 0.0
    %145 = vmatmul.mubr.f32.gmra.mrb[0].mxu0 %v73
    %v146 = vpop.f32.mrb[0].mxu0
    %v147 = vadd.f32 %v66, %v146
    %v148 = vpop.f32.mrb[0].mxu0
    %149 = vdwg.mxu0
    %150 = vst [vmem:[#allocation3] sm:$0xff] %v142
    %151 = vst [vmem:[#allocation3 + $0x8] sm:$0xff] %v147
    %v152 = vld [vmem:[#allocation7] sm:$0xff]
    %v153 = vld [vmem:[#allocation7 + $0x8] sm:$0xff]
    %v154 = vld [vmem:[#allocation7 + $0x10] sm:$0xff]
    %v155 = vld [vmem:[#allocation7 + $0x18] sm:$0xff]
    %v156 = vld [vmem:[#allocation3] sm:$0x3]
    %vm157 = vcmask 261120
    %v159 = vsel %vm157, 0.0, 0
    %161 = vmatprep.subr.mxu0 0.0
    %162 = vmatpush1.msra.mxu0 %v152
    %163 = vmatprep.subr.mxu0 0.0
    %164 = vmatpush1.msra.mxu0 %v153
    %165 = vmatprep.subr.mxu0 0.0
    %166 = vmatpush1.msra.mxu0 %v154
    %167 = vmatprep.subr.mxu0 0.0
    %168 = vmatpush1.msra.mxu0 %v155
    %169 = vmatprep.subr.mxu0 0.0
    %170 = vmatpush1.msra.mxu0 0.0
    %171 = vmatprep.subr.mxu0 0.0
    %172 = vmatpush1.msra.mxu0 0.0
    %173 = vmatprep.subr.mxu0 0.0
    %174 = vmatpush1.msra.mxu0 0.0
    %175 = vmatprep.subr.mxu0 0.0
    %176 = vmatpush1.msra.mxu0 0.0
    %177 = vmatprep.subr.mxu0 0.0
    %178 = vmatpush1.msra.mxu0 0.0
    %179 = vmatprep.subr.mxu0 0.0
    %180 = vmatpush1.msra.mxu0 0.0
    %181 = vmatprep.subr.mxu0 0.0
    %182 = vmatpush1.msra.mxu0 0.0
    %183 = vmatprep.subr.mxu0 0.0
    %184 = vmatpush1.msra.mxu0 0.0
    %185 = vmatprep.subr.mxu0 0.0
    %186 = vmatpush1.msra.mxu0 0.0
    %187 = vmatprep.subr.mxu0 0.0
    %188 = vmatpush1.msra.mxu0 0.0
    %189 = vmatprep.subr.mxu0 0.0
    %190 = vmatpush1.msra.mxu0 0.0
    %191 = vmatprep.subr.mxu0 0.0
    %192 = vmatpush1.msra.mxu0 0.0
    %193 = vmatprep.subr.mxu0 0.0
    %194 = vmatpush1.msra.mxu0 0.0
    %195 = vmatprep.subr.mxu0 0.0
    %196 = vmatpush1.msra.mxu0 0.0
    %197 = vmatprep.subr.mxu0 0.0
    %198 = vmatpush1.msra.mxu0 0.0
    %199 = vmatprep.subr.mxu0 0.0
    %200 = vmatpush1.msra.mxu0 0.0
    %201 = vmatprep.subr.mxu0 0.0
    %202 = vmatpush1.msra.mxu0 0.0
    %203 = vmatprep.subr.mxu0 0.0
    %204 = vmatpush1.msra.mxu0 0.0
    %205 = vmatprep.subr.mxu0 0.0
    %206 = vmatpush1.msra.mxu0 0.0
    %207 = vmatprep.subr.mxu0 0.0
    %208 = vmatpush1.msra.mxu0 0.0
    %209 = vmatprep.subr.mxu0 0.0
    %210 = vmatpush1.msra.mxu0 0.0
    %211 = vmatprep.subr.mxu0 0.0
    %212 = vmatpush1.msra.mxu0 0.0
    %213 = vmatprep.subr.mxu0 0.0
    %214 = vmatpush1.msra.mxu0 0.0
    %215 = vmatprep.subr.mxu0 0.0
    %216 = vmatpush1.msra.mxu0 0.0
    %217 = vmatprep.subr.mxu0 0.0
    %218 = vmatpush1.msra.mxu0 0.0
    %219 = vmatprep.subr.mxu0 0.0
    %220 = vmatpush1.msra.mxu0 0.0
    %221 = vmatprep.subr.mxu0 0.0
    %222 = vmatpush1.msra.mxu0 0.0
    %223 = vmatprep.subr.mxu0 0.0
    %224 = vmatpush1.msra.mxu0 0.0
    %225 = vmatprep.mubr.f32.mxu0 0.0
    %226 = vmatmul.mubr.f32.gmra.mrb[0].mxu0 %v159
    %v227 = vpop.f32.mrb[0].mxu0
    %v228 = vadd.f32 0.0, %v227
    %v229 = vpop.f32.mrb[0].mxu0
    %230 = vdwg.mxu0
    %v231 = vadd.f32 %v156, %v228
    %v232 = vxor.u32 %v231, 2147483648
    %v233 = vmul.f32 %v232, 1.442695
    %v234 = vpow.pop %v233
    %v235 = vadd.f32 %v234, 1.0
    %v236 = vrcp.pop %v235
    %v237 = vmul.f32 1.0, %v236
    %v238 = vtanh.pop %v231
    %v239 = vmul.f32 %v237, 0.0
    %241 = vrot.lane.b32.xlu0 %v238, 64
    %v242 = vpop.permute.xlu0 %241
    %v244 = vmul.f32 %v237, %v242
    %246 = vrot.lane.b32.xlu0 %v244, 32
    %v247 = vpop.permute.xlu0 %246
    %v249 = vadd.f32 %v239, %v247
    %v250 = vtanh.pop %v249
    %252 = vrot.lane.b32.xlu0 %v250, 64
    %v253 = vpop.permute.xlu0 %252
    %v255 = vmul.f32 %v237, %v253
    %257 = vrot.lane.b32.xlu0 %v255, 32
    %v258 = vpop.permute.xlu0 %257
    %vm260 = vcmask 254976
    %261 = vst.msk [vmem:[#allocation2] sm:$0x3] %vm260, %v258
    %v262 = vld [vmem:[#allocation3 + $0x2] sm:$0x3]
    %v263 = vsel %vm157, %v258, 0
    %265 = vmatprep.subr.mxu0 0.0
    %266 = vmatpush1.msra.mxu0 %v152
    %267 = vmatprep.subr.mxu0 0.0
    %268 = vmatpush1.msra.mxu0 %v153
    %269 = vmatprep.subr.mxu0 0.0
    %270 = vmatpush1.msra.mxu0 %v154
    %271 = vmatprep.subr.mxu0 0.0
    %272 = vmatpush1.msra.mxu0 %v155
    %273 = vmatprep.subr.mxu0 0.0
    %274 = vmatpush1.msra.mxu0 0.0
    %275 = vmatprep.subr.mxu0 0.0
    %276 = vmatpush1.msra.mxu0 0.0
    %277 = vmatprep.subr.mxu0 0.0
    %278 = vmatpush1.msra.mxu0 0.0
    %279 = vmatprep.subr.mxu0 0.0
    %280 = vmatpush1.msra.mxu0 0.0
    %281 = vmatprep.subr.mxu0 0.0
    %282 = vmatpush1.msra.mxu0 0.0
    %283 = vmatprep.subr.mxu0 0.0
    %284 = vmatpush1.msra.mxu0 0.0
    %285 = vmatprep.subr.mxu0 0.0
    %286 = vmatpush1.msra.mxu0 0.0
    %287 = vmatprep.subr.mxu0 0.0
    %288 = vmatpush1.msra.mxu0 0.0
    %289 = vmatprep.subr.mxu0 0.0
    %290 = vmatpush1.msra.mxu0 0.0
    %291 = vmatprep.subr.mxu0 0.0
    %292 = vmatpush1.msra.mxu0 0.0
    %293 = vmatprep.subr.mxu0 0.0
    %294 = vmatpush1.msra.mxu0 0.0
    %295 = vmatprep.subr.mxu0 0.0
    %296 = vmatpush1.msra.mxu0 0.0
    %297 = vmatprep.subr.mxu0 0.0
    %298 = vmatpush1.msra.mxu0 0.0
    %299 = vmatprep.subr.mxu0 0.0
    %300 = vmatpush1.msra.mxu0 0.0
    %301 = vmatprep.subr.mxu0 0.0
    %302 = vmatpush1.msra.mxu0 0.0
    %303 = vmatprep.subr.mxu0 0.0
    %304 = vmatpush1.msra.mxu0 0.0
    %305 = vmatprep.subr.mxu0 0.0
    %306 = vmatpush1.msra.mxu0 0.0
    %307 = vmatprep.subr.mxu0 0.0
    %308 = vmatpush1.msra.mxu0 0.0
    %309 = vmatprep.subr.mxu0 0.0
    %310 = vmatpush1.msra.mxu0 0.0
    %311 = vmatprep.subr.mxu0 0.0
    %312 = vmatpush1.msra.mxu0 0.0
    %313 = vmatprep.subr.mxu0 0.0
    %314 = vmatpush1.msra.mxu0 0.0
    %315 = vmatprep.subr.mxu0 0.0
    %316 = vmatpush1.msra.mxu0 0.0
    %317 = vmatprep.subr.mxu0 0.0
    %318 = vmatpush1.msra.mxu0 0.0
    %319 = vmatprep.subr.mxu0 0.0
    %320 = vmatpush1.msra.mxu0 0.0
    %321 = vmatprep.subr.mxu0 0.0
    %322 = vmatpush1.msra.mxu0 0.0
    %323 = vmatprep.subr.mxu0 0.0
    %324 = vmatpush1.msra.mxu0 0.0
    %325 = vmatprep.subr.mxu0 0.0
    %326 = vmatpush1.msra.mxu0 0.0
    %327 = vmatprep.subr.mxu0 0.0
    %328 = vmatpush1.msra.mxu0 0.0
    %329 = vmatprep.mubr.f32.mxu0 0.0
    %330 = vmatmul.mubr.f32.gmra.mrb[0].mxu0 %v263
    %v331 = vpop.f32.mrb[0].mxu0
    %v332 = vadd.f32 0.0, %v331
    %v333 = vpop.f32.mrb[0].mxu0
    %334 = vdwg.mxu0
    %v335 = vadd.f32 %v262, %v332
    %v336 = vxor.u32 %v335, 2147483648
    %v337 = vmul.f32 %v336, 1.442695
    %v338 = vpow.pop %v337
    %v339 = vadd.f32 %v338, 1.0
    %v340 = vrcp.pop %v339
    %v341 = vmul.f32 1.0, %v340
    %v342 = vtanh.pop %v335
    %v343 = vmul.f32 %v341, %v249
    %345 = vrot.lane.b32.xlu0 %v342, 64
    %v346 = vpop.permute.xlu0 %345
    %v348 = vmul.f32 %v341, %v346
    %350 = vrot.lane.b32.xlu0 %v348, 32
    %v351 = vpop.permute.xlu0 %350
    %v353 = vadd.f32 %v343, %v351
    %v354 = vtanh.pop %v353
    %356 = vrot.lane.b32.xlu0 %v354, 64
    %v357 = vpop.permute.xlu0 %356
    %v359 = vmul.f32 %v341, %v357
    %361 = vrot.lane.b32.xlu0 %v359, 32
    %v362 = vpop.permute.xlu0 %361
    %364 = vst.msk [vmem:[#allocation2 + $0x2] sm:$0x3] %vm260, %v362
    %v365 = vld [vmem:[#allocation3 + $0x4] sm:$0x3]
    %v366 = vsel %vm157, %v362, 0
    %368 = vmatprep.subr.mxu0 0.0
    %369 = vmatpush1.msra.mxu0 %v152
    %370 = vmatprep.subr.mxu0 0.0
    %371 = vmatpush1.msra.mxu0 %v153
    %372 = vmatprep.subr.mxu0 0.0
    %373 = vmatpush1.msra.mxu0 %v154
    %374 = vmatprep.subr.mxu0 0.0
    %375 = vmatpush1.msra.mxu0 %v155
    %376 = vmatprep.subr.mxu0 0.0
    %377 = vmatpush1.msra.mxu0 0.0
    %378 = vmatprep.subr.mxu0 0.0
    %379 = vmatpush1.msra.mxu0 0.0
    %380 = vmatprep.subr.mxu0 0.0
    %381 = vmatpush1.msra.mxu0 0.0
    %382 = vmatprep.subr.mxu0 0.0
    %383 = vmatpush1.msra.mxu0 0.0
    %384 = vmatprep.subr.mxu0 0.0
    %385 = vmatpush1.msra.mxu0 0.0
    %386 = vmatprep.subr.mxu0 0.0
    %387 = vmatpush1.msra.mxu0 0.0
    %388 = vmatprep.subr.mxu0 0.0
    %389 = vmatpush1.msra.mxu0 0.0
    %390 = vmatprep.subr.mxu0 0.0
    %391 = vmatpush1.msra.mxu0 0.0
    %392 = vmatprep.subr.mxu0 0.0
    %393 = vmatpush1.msra.mxu0 0.0
    %394 = vmatprep.subr.mxu0 0.0
    %395 = vmatpush1.msra.mxu0 0.0
    %396 = vmatprep.subr.mxu0 0.0
    %397 = vmatpush1.msra.mxu0 0.0
    %398 = vmatprep.subr.mxu0 0.0
    %399 = vmatpush1.msra.mxu0 0.0
    %400 = vmatprep.subr.mxu0 0.0
    %401 = vmatpush1.msra.mxu0 0.0
    %402 = vmatprep.subr.mxu0 0.0
    %403 = vmatpush1.msra.mxu0 0.0
    %404 = vmatprep.subr.mxu0 0.0
    %405 = vmatpush1.msra.mxu0 0.0
    %406 = vmatprep.subr.mxu0 0.0
    %407 = vmatpush1.msra.mxu0 0.0
    %408 = vmatprep.subr.mxu0 0.0
    %409 = vmatpush1.msra.mxu0 0.0
    %410 = vmatprep.subr.mxu0 0.0
    %411 = vmatpush1.msra.mxu0 0.0
    %412 = vmatprep.subr.mxu0 0.0
    %413 = vmatpush1.msra.mxu0 0.0
    %414 = vmatprep.subr.mxu0 0.0
    %415 = vmatpush1.msra.mxu0 0.0
    %416 = vmatprep.subr.mxu0 0.0
    %417 = vmatpush1.msra.mxu0 0.0
    %418 = vmatprep.subr.mxu0 0.0
    %419 = vmatpush1.msra.mxu0 0.0
    %420 = vmatprep.subr.mxu0 0.0
    %421 = vmatpush1.msra.mxu0 0.0
    %422 = vmatprep.subr.mxu0 0.0
    %423 = vmatpush1.msra.mxu0 0.0
    %424 = vmatprep.subr.mxu0 0.0
    %425 = vmatpush1.msra.mxu0 0.0
    %426 = vmatprep.subr.mxu0 0.0
    %427 = vmatpush1.msra.mxu0 0.0
    %428 = vmatprep.subr.mxu0 0.0
    %429 = vmatpush1.msra.mxu0 0.0
    %430 = vmatprep.subr.mxu0 0.0
    %431 = vmatpush1.msra.mxu0 0.0
    %432 = vmatprep.mubr.f32.mxu0 0.0
    %433 = vmatmul.mubr.f32.gmra.mrb[0].mxu0 %v366
    %v434 = vpop.f32.mrb[0].mxu0
    %v435 = vadd.f32 0.0, %v434
    %v436 = vpop.f32.mrb[0].mxu0
    %437 = vdwg.mxu0
    %v438 = vadd.f32 %v365, %v435
    %v439 = vxor.u32 %v438, 2147483648
    %v440 = vmul.f32 %v439, 1.442695
    %v441 = vpow.pop %v440
    %v442 = vadd.f32 %v441, 1.0
    %v443 = vrcp.pop %v442
    %v444 = vmul.f32 1.0, %v443
    %v445 = vtanh.pop %v438
    %v446 = vmul.f32 %v444, %v353
    %448 = vrot.lane.b32.xlu0 %v445, 64
    %v449 = vpop.permute.xlu0 %448
    %v451 = vmul.f32 %v444, %v449
    %453 = vrot.lane.b32.xlu0 %v451, 32
    %v454 = vpop.permute.xlu0 %453
    %v456 = vadd.f32 %v446, %v454
    %v457 = vtanh.pop %v456
    %459 = vrot.lane.b32.xlu0 %v457, 64
    %v460 = vpop.permute.xlu0 %459
    %v462 = vmul.f32 %v444, %v460
    %464 = vrot.lane.b32.xlu0 %v462, 32
    %v465 = vpop.permute.xlu0 %464
    %467 = vst.msk [vmem:[#allocation2 + $0x4] sm:$0x3] %vm260, %v465
    %v468 = vld [vmem:[#allocation3 + $0x6] sm:$0x3]
    %v469 = vsel %vm157, %v465, 0
    %471 = vmatprep.subr.mxu0 0.0
    %472 = vmatpush1.msra.mxu0 %v152
    %473 = vmatprep.subr.mxu0 0.0
    %474 = vmatpush1.msra.mxu0 %v153
    %475 = vmatprep.subr.mxu0 0.0
    %476 = vmatpush1.msra.mxu0 %v154
    %477 = vmatprep.subr.mxu0 0.0
    %478 = vmatpush1.msra.mxu0 %v155
    %479 = vmatprep.subr.mxu0 0.0
    %480 = vmatpush1.msra.mxu0 0.0
    %481 = vmatprep.subr.mxu0 0.0
    %482 = vmatpush1.msra.mxu0 0.0
    %483 = vmatprep.subr.mxu0 0.0
    %484 = vmatpush1.msra.mxu0 0.0
    %485 = vmatprep.subr.mxu0 0.0
    %486 = vmatpush1.msra.mxu0 0.0
    %487 = vmatprep.subr.mxu0 0.0
    %488 = vmatpush1.msra.mxu0 0.0
    %489 = vmatprep.subr.mxu0 0.0
    %490 = vmatpush1.msra.mxu0 0.0
    %491 = vmatprep.subr.mxu0 0.0
    %492 = vmatpush1.msra.mxu0 0.0
    %493 = vmatprep.subr.mxu0 0.0
    %494 = vmatpush1.msra.mxu0 0.0
    %495 = vmatprep.subr.mxu0 0.0
    %496 = vmatpush1.msra.mxu0 0.0
    %497 = vmatprep.subr.mxu0 0.0
    %498 = vmatpush1.msra.mxu0 0.0
    %499 = vmatprep.subr.mxu0 0.0
    %500 = vmatpush1.msra.mxu0 0.0
    %501 = vmatprep.subr.mxu0 0.0
    %502 = vmatpush1.msra.mxu0 0.0
    %503 = vmatprep.subr.mxu0 0.0
    %504 = vmatpush1.msra.mxu0 0.0
    %505 = vmatprep.subr.mxu0 0.0
    %506 = vmatpush1.msra.mxu0 0.0
    %507 = vmatprep.subr.mxu0 0.0
    %508 = vmatpush1.msra.mxu0 0.0
    %509 = vmatprep.subr.mxu0 0.0
    %510 = vmatpush1.msra.mxu0 0.0
    %511 = vmatprep.subr.mxu0 0.0
    %512 = vmatpush1.msra.mxu0 0.0
    %513 = vmatprep.subr.mxu0 0.0
    %514 = vmatpush1.msra.mxu0 0.0
    %515 = vmatprep.subr.mxu0 0.0
    %516 = vmatpush1.msra.mxu0 0.0
    %517 = vmatprep.subr.mxu0 0.0
    %518 = vmatpush1.msra.mxu0 0.0
    %519 = vmatprep.subr.mxu0 0.0
    %520 = vmatpush1.msra.mxu0 0.0
    %521 = vmatprep.subr.mxu0 0.0
    %522 = vmatpush1.msra.mxu0 0.0
    %523 = vmatprep.subr.mxu0 0.0
    %524 = vmatpush1.msra.mxu0 0.0
    %525 = vmatprep.subr.mxu0 0.0
    %526 = vmatpush1.msra.mxu0 0.0
    %527 = vmatprep.subr.mxu0 0.0
    %528 = vmatpush1.msra.mxu0 0.0
    %529 = vmatprep.subr.mxu0 0.0
    %530 = vmatpush1.msra.mxu0 0.0
    %531 = vmatprep.subr.mxu0 0.0
    %532 = vmatpush1.msra.mxu0 0.0
    %533 = vmatprep.subr.mxu0 0.0
    %534 = vmatpush1.msra.mxu0 0.0
    %535 = vmatprep.mubr.f32.mxu0 0.0
    %536 = vmatmul.mubr.f32.gmra.mrb[0].mxu0 %v469
    %v537 = vpop.f32.mrb[0].mxu0
    %v538 = vadd.f32 0.0, %v537
    %v539 = vpop.f32.mrb[0].mxu0
    %540 = vdwg.mxu0
    %v541 = vadd.f32 %v468, %v538
    %v542 = vxor.u32 %v541, 2147483648
    %v543 = vmul.f32 %v542, 1.442695
    %v544 = vpow.pop %v543
    %v545 = vadd.f32 %v544, 1.0
    %v546 = vrcp.pop %v545
    %v547 = vmul.f32 1.0, %v546
    %v548 = vtanh.pop %v541
    %v549 = vmul.f32 %v547, %v456
    %551 = vrot.lane.b32.xlu0 %v548, 64
    %v552 = vpop.permute.xlu0 %551
    %v554 = vmul.f32 %v547, %v552
    %556 = vrot.lane.b32.xlu0 %v554, 32
    %v557 = vpop.permute.xlu0 %556
    %v559 = vadd.f32 %v549, %v557
    %v560 = vtanh.pop %v559
    %562 = vrot.lane.b32.xlu0 %v560, 64
    %v563 = vpop.permute.xlu0 %562
    %v565 = vmul.f32 %v547, %v563
    %567 = vrot.lane.b32.xlu0 %v565, 32
    %v568 = vpop.permute.xlu0 %567
    %570 = vst.msk [vmem:[#allocation2 + $0x6] sm:$0x3] %vm260, %v568
    %v571 = vld [vmem:[#allocation3 + $0x8] sm:$0x3]
    %v572 = vsel %vm157, %v568, 0
    %574 = vmatprep.subr.mxu0 0.0
    %575 = vmatpush1.msra.mxu0 %v152
    %576 = vmatprep.subr.mxu0 0.0
    %577 = vmatpush1.msra.mxu0 %v153
    %578 = vmatprep.subr.mxu0 0.0
    %579 = vmatpush1.msra.mxu0 %v154
    %580 = vmatprep.subr.mxu0 0.0
    %581 = vmatpush1.msra.mxu0 %v155
    %582 = vmatprep.subr.mxu0 0.0
    %583 = vmatpush1.msra.mxu0 0.0
    %584 = vmatprep.subr.mxu0 0.0
    %585 = vmatpush1.msra.mxu0 0.0
    %586 = vmatprep.subr.mxu0 0.0
    %587 = vmatpush1.msra.mxu0 0.0
    %588 = vmatprep.subr.mxu0 0.0
    %589 = vmatpush1.msra.mxu0 0.0
    %590 = vmatprep.subr.mxu0 0.0
    %591 = vmatpush1.msra.mxu0 0.0
    %592 = vmatprep.subr.mxu0 0.0
    %593 = vmatpush1.msra.mxu0 0.0
    %594 = vmatprep.subr.mxu0 0.0
    %595 = vmatpush1.msra.mxu0 0.0
    %596 = vmatprep.subr.mxu0 0.0
    %597 = vmatpush1.msra.mxu0 0.0
    %598 = vmatprep.subr.mxu0 0.0
    %599 = vmatpush1.msra.mxu0 0.0
    %600 = vmatprep.subr.mxu0 0.0
    %601 = vmatpush1.msra.mxu0 0.0
    %602 = vmatprep.subr.mxu0 0.0
    %603 = vmatpush1.msra.mxu0 0.0
    %604 = vmatprep.subr.mxu0 0.0
    %605 = vmatpush1.msra.mxu0 0.0
    %606 = vmatprep.subr.mxu0 0.0
    %607 = vmatpush1.msra.mxu0 0.0
    %608 = vmatprep.subr.mxu0 0.0
    %609 = vmatpush1.msra.mxu0 0.0
    %610 = vmatprep.subr.mxu0 0.0
    %611 = vmatpush1.msra.mxu0 0.0
    %612 = vmatprep.subr.mxu0 0.0
    %613 = vmatpush1.msra.mxu0 0.0
    %614 = vmatprep.subr.mxu0 0.0
    %615 = vmatpush1.msra.mxu0 0.0
    %616 = vmatprep.subr.mxu0 0.0
    %617 = vmatpush1.msra.mxu0 0.0
    %618 = vmatprep.subr.mxu0 0.0
    %619 = vmatpush1.msra.mxu0 0.0
    %620 = vmatprep.subr.mxu0 0.0
    %621 = vmatpush1.msra.mxu0 0.0
    %622 = vmatprep.subr.mxu0 0.0
    %623 = vmatpush1.msra.mxu0 0.0
    %624 = vmatprep.subr.mxu0 0.0
    %625 = vmatpush1.msra.mxu0 0.0
    %626 = vmatprep.subr.mxu0 0.0
    %627 = vmatpush1.msra.mxu0 0.0
    %628 = vmatprep.subr.mxu0 0.0
    %629 = vmatpush1.msra.mxu0 0.0
    %630 = vmatprep.subr.mxu0 0.0
    %631 = vmatpush1.msra.mxu0 0.0
    %632 = vmatprep.subr.mxu0 0.0
    %633 = vmatpush1.msra.mxu0 0.0
    %634 = vmatprep.subr.mxu0 0.0
    %635 = vmatpush1.msra.mxu0 0.0
    %636 = vmatprep.subr.mxu0 0.0
    %637 = vmatpush1.msra.mxu0 0.0
    %638 = vmatprep.mubr.f32.mxu0 0.0
    %639 = vmatmul.mubr.f32.gmra.mrb[0].mxu0 %v572
    %v640 = vpop.f32.mrb[0].mxu0
    %v641 = vadd.f32 0.0, %v640
    %v642 = vpop.f32.mrb[0].mxu0
    %643 = vdwg.mxu0
    %v644 = vadd.f32 %v571, %v641
    %v645 = vxor.u32 %v644, 2147483648
    %v646 = vmul.f32 %v645, 1.442695
    %v647 = vpow.pop %v646
    %v648 = vadd.f32 %v647, 1.0
    %v649 = vrcp.pop %v648
    %v650 = vmul.f32 1.0, %v649
    %v651 = vtanh.pop %v644
    %v652 = vmul.f32 %v650, %v559
    %654 = vrot.lane.b32.xlu0 %v651, 64
    %v655 = vpop.permute.xlu0 %654
    %v657 = vmul.f32 %v650, %v655
    %659 = vrot.lane.b32.xlu0 %v657, 32
    %v660 = vpop.permute.xlu0 %659
    %v662 = vadd.f32 %v652, %v660
    %v663 = vtanh.pop %v662
    %665 = vrot.lane.b32.xlu0 %v663, 64
    %v666 = vpop.permute.xlu0 %665
    %v668 = vmul.f32 %v650, %v666
    %670 = vrot.lane.b32.xlu0 %v668, 32
    %v671 = vpop.permute.xlu0 %670
    %673 = vst.msk [vmem:[#allocation2 + $0x8] sm:$0x3] %vm260, %v671
    %v674 = vld [vmem:[#allocation3 + $0xa] sm:$0x3]
    %v675 = vsel %vm157, %v671, 0
    %677 = vmatprep.subr.mxu0 0.0
    %678 = vmatpush1.msra.mxu0 %v152
    %679 = vmatprep.subr.mxu0 0.0
    %680 = vmatpush1.msra.mxu0 %v153
    %681 = vmatprep.subr.mxu0 0.0
    %682 = vmatpush1.msra.mxu0 %v154
    %683 = vmatprep.subr.mxu0 0.0
    %684 = vmatpush1.msra.mxu0 %v155
    %685 = vmatprep.subr.mxu0 0.0
    %686 = vmatpush1.msra.mxu0 0.0
    %687 = vmatprep.subr.mxu0 0.0
    %688 = vmatpush1.msra.mxu0 0.0
    %689 = vmatprep.subr.mxu0 0.0
    %690 = vmatpush1.msra.mxu0 0.0
    %691 = vmatprep.subr.mxu0 0.0
    %692 = vmatpush1.msra.mxu0 0.0
    %693 = vmatprep.subr.mxu0 0.0
    %694 = vmatpush1.msra.mxu0 0.0
    %695 = vmatprep.subr.mxu0 0.0
    %696 = vmatpush1.msra.mxu0 0.0
    %697 = vmatprep.subr.mxu0 0.0
    %698 = vmatpush1.msra.mxu0 0.0
    %699 = vmatprep.subr.mxu0 0.0
    %700 = vmatpush1.msra.mxu0 0.0
    %701 = vmatprep.subr.mxu0 0.0
    %702 = vmatpush1.msra.mxu0 0.0
    %703 = vmatprep.subr.mxu0 0.0
    %704 = vmatpush1.msra.mxu0 0.0
    %705 = vmatprep.subr.mxu0 0.0
    %706 = vmatpush1.msra.mxu0 0.0
    %707 = vmatprep.subr.mxu0 0.0
    %708 = vmatpush1.msra.mxu0 0.0
    %709 = vmatprep.subr.mxu0 0.0
    %710 = vmatpush1.msra.mxu0 0.0
    %711 = vmatprep.subr.mxu0 0.0
    %712 = vmatpush1.msra.mxu0 0.0
    %713 = vmatprep.subr.mxu0 0.0
    %714 = vmatpush1.msra.mxu0 0.0
    %715 = vmatprep.subr.mxu0 0.0
    %716 = vmatpush1.msra.mxu0 0.0
    %717 = vmatprep.subr.mxu0 0.0
    %718 = vmatpush1.msra.mxu0 0.0
    %719 = vmatprep.subr.mxu0 0.0
    %720 = vmatpush1.msra.mxu0 0.0
    %721 = vmatprep.subr.mxu0 0.0
    %722 = vmatpush1.msra.mxu0 0.0
    %723 = vmatprep.subr.mxu0 0.0
    %724 = vmatpush1.msra.mxu0 0.0
    %725 = vmatprep.subr.mxu0 0.0
    %726 = vmatpush1.msra.mxu0 0.0
    %727 = vmatprep.subr.mxu0 0.0
    %728 = vmatpush1.msra.mxu0 0.0
    %729 = vmatprep.subr.mxu0 0.0
    %730 = vmatpush1.msra.mxu0 0.0
    %731 = vmatprep.subr.mxu0 0.0
    %732 = vmatpush1.msra.mxu0 0.0
    %733 = vmatprep.subr.mxu0 0.0
    %734 = vmatpush1.msra.mxu0 0.0
    %735 = vmatprep.subr.mxu0 0.0
    %736 = vmatpush1.msra.mxu0 0.0
    %737 = vmatprep.subr.mxu0 0.0
    %738 = vmatpush1.msra.mxu0 0.0
    %739 = vmatprep.subr.mxu0 0.0
    %740 = vmatpush1.msra.mxu0 0.0
    %741 = vmatprep.mubr.f32.mxu0 0.0
    %742 = vmatmul.mubr.f32.gmra.mrb[0].mxu0 %v675
    %v743 = vpop.f32.mrb[0].mxu0
    %v744 = vadd.f32 0.0, %v743
    %v745 = vpop.f32.mrb[0].mxu0
    %746 = vdwg.mxu0
    %v747 = vadd.f32 %v674, %v744
    %v748 = vxor.u32 %v747, 2147483648
    %v749 = vmul.f32 %v748, 1.442695
    %v750 = vpow.pop %v749
    %v751 = vadd.f32 %v750, 1.0
    %v752 = vrcp.pop %v751
    %v753 = vmul.f32 1.0, %v752
    %v754 = vtanh.pop %v747
    %v755 = vmul.f32 %v753, %v662
    %757 = vrot.lane.b32.xlu0 %v754, 64
    %v758 = vpop.permute.xlu0 %757
    %v760 = vmul.f32 %v753, %v758
    %762 = vrot.lane.b32.xlu0 %v760, 32
    %v763 = vpop.permute.xlu0 %762
    %v765 = vadd.f32 %v755, %v763
    %v766 = vtanh.pop %v765
    %768 = vrot.lane.b32.xlu0 %v766, 64
    %v769 = vpop.permute.xlu0 %768
    %v771 = vmul.f32 %v753, %v769
    %773 = vrot.lane.b32.xlu0 %v771, 32
    %v774 = vpop.permute.xlu0 %773
    %776 = vst.msk [vmem:[#allocation2 + $0xa] sm:$0x3] %vm260, %v774
    %v777 = vld [vmem:[#allocation3 + $0xc] sm:$0x3]
    %v778 = vsel %vm157, %v774, 0
    %780 = vmatprep.subr.mxu0 0.0
    %781 = vmatpush1.msra.mxu0 %v152
    %782 = vmatprep.subr.mxu0 0.0
    %783 = vmatpush1.msra.mxu0 %v153
    %784 = vmatprep.subr.mxu0 0.0
    %785 = vmatpush1.msra.mxu0 %v154
    %786 = vmatprep.subr.mxu0 0.0
    %787 = vmatpush1.msra.mxu0 %v155
    %788 = vmatprep.subr.mxu0 0.0
    %789 = vmatpush1.msra.mxu0 0.0
    %790 = vmatprep.subr.mxu0 0.0
    %791 = vmatpush1.msra.mxu0 0.0
    %792 = vmatprep.subr.mxu0 0.0
    %793 = vmatpush1.msra.mxu0 0.0
    %794 = vmatprep.subr.mxu0 0.0
    %795 = vmatpush1.msra.mxu0 0.0
    %796 = vmatprep.subr.mxu0 0.0
    %797 = vmatpush1.msra.mxu0 0.0
    %798 = vmatprep.subr.mxu0 0.0
    %799 = vmatpush1.msra.mxu0 0.0
    %800 = vmatprep.subr.mxu0 0.0
    %801 = vmatpush1.msra.mxu0 0.0
    %802 = vmatprep.subr.mxu0 0.0
    %803 = vmatpush1.msra.mxu0 0.0
    %804 = vmatprep.subr.mxu0 0.0
    %805 = vmatpush1.msra.mxu0 0.0
    %806 = vmatprep.subr.mxu0 0.0
    %807 = vmatpush1.msra.mxu0 0.0
    %808 = vmatprep.subr.mxu0 0.0
    %809 = vmatpush1.msra.mxu0 0.0
    %810 = vmatprep.subr.mxu0 0.0
    %811 = vmatpush1.msra.mxu0 0.0
    %812 = vmatprep.subr.mxu0 0.0
    %813 = vmatpush1.msra.mxu0 0.0
    %814 = vmatprep.subr.mxu0 0.0
    %815 = vmatpush1.msra.mxu0 0.0
    %816 = vmatprep.subr.mxu0 0.0
    %817 = vmatpush1.msra.mxu0 0.0
    %818 = vmatprep.subr.mxu0 0.0
    %819 = vmatpush1.msra.mxu0 0.0
    %820 = vmatprep.subr.mxu0 0.0
    %821 = vmatpush1.msra.mxu0 0.0
    %822 = vmatprep.subr.mxu0 0.0
    %823 = vmatpush1.msra.mxu0 0.0
    %824 = vmatprep.subr.mxu0 0.0
    %825 = vmatpush1.msra.mxu0 0.0
    %826 = vmatprep.subr.mxu0 0.0
    %827 = vmatpush1.msra.mxu0 0.0
    %828 = vmatprep.subr.mxu0 0.0
    %829 = vmatpush1.msra.mxu0 0.0
    %830 = vmatprep.subr.mxu0 0.0
    %831 = vmatpush1.msra.mxu0 0.0
    %832 = vmatprep.subr.mxu0 0.0
    %833 = vmatpush1.msra.mxu0 0.0
    %834 = vmatprep.subr.mxu0 0.0
    %835 = vmatpush1.msra.mxu0 0.0
    %836 = vmatprep.subr.mxu0 0.0
    %837 = vmatpush1.msra.mxu0 0.0
    %838 = vmatprep.subr.mxu0 0.0
    %839 = vmatpush1.msra.mxu0 0.0
    %840 = vmatprep.subr.mxu0 0.0
    %841 = vmatpush1.msra.mxu0 0.0
    %842 = vmatprep.subr.mxu0 0.0
    %843 = vmatpush1.msra.mxu0 0.0
    %844 = vmatprep.mubr.f32.mxu0 0.0
    %845 = vmatmul.mubr.f32.gmra.mrb[0].mxu0 %v778
    %v846 = vpop.f32.mrb[0].mxu0
    %v847 = vadd.f32 0.0, %v846
    %v848 = vpop.f32.mrb[0].mxu0
    %849 = vdwg.mxu0
    %v850 = vadd.f32 %v777, %v847
    %v851 = vxor.u32 %v850, 2147483648
    %v852 = vmul.f32 %v851, 1.442695
    %v853 = vpow.pop %v852
    %v854 = vadd.f32 %v853, 1.0
    %v855 = vrcp.pop %v854
    %v856 = vmul.f32 1.0, %v855
    %v857 = vtanh.pop %v850
    %v858 = vmul.f32 %v856, %v765
    %860 = vrot.lane.b32.xlu0 %v857, 64
    %v861 = vpop.permute.xlu0 %860
    %v863 = vmul.f32 %v856, %v861
    %865 = vrot.lane.b32.xlu0 %v863, 32
    %v866 = vpop.permute.xlu0 %865
    %v868 = vadd.f32 %v858, %v866
    %v869 = vtanh.pop %v868
    %871 = vrot.lane.b32.xlu0 %v869, 64
    %v872 = vpop.permute.xlu0 %871
    %v874 = vmul.f32 %v856, %v872
    %876 = vrot.lane.b32.xlu0 %v874, 32
    %v877 = vpop.permute.xlu0 %876
    %879 = vst.msk [vmem:[#allocation2 + $0xc] sm:$0x3] %vm260, %v877
    %v880 = vld [vmem:[#allocation3 + $0xe] sm:$0x3]
    %v881 = vsel %vm157, %v877, 0
    %883 = vmatprep.subr.mxu0 0.0
    %884 = vmatpush1.msra.mxu0 %v152
    %885 = vmatprep.subr.mxu0 0.0
    %886 = vmatpush1.msra.mxu0 %v153
    %887 = vmatprep.subr.mxu0 0.0
    %888 = vmatpush1.msra.mxu0 %v154
    %889 = vmatprep.subr.mxu0 0.0
    %890 = vmatpush1.msra.mxu0 %v155
    %891 = vmatprep.subr.mxu0 0.0
    %892 = vmatpush1.msra.mxu0 0.0
    %893 = vmatprep.subr.mxu0 0.0
    %894 = vmatpush1.msra.mxu0 0.0
    %895 = vmatprep.subr.mxu0 0.0
    %896 = vmatpush1.msra.mxu0 0.0
    %897 = vmatprep.subr.mxu0 0.0
    %898 = vmatpush1.msra.mxu0 0.0
    %899 = vmatprep.subr.mxu0 0.0
    %900 = vmatpush1.msra.mxu0 0.0
    %901 = vmatprep.subr.mxu0 0.0
    %902 = vmatpush1.msra.mxu0 0.0
    %903 = vmatprep.subr.mxu0 0.0
    %904 = vmatpush1.msra.mxu0 0.0
    %905 = vmatprep.subr.mxu0 0.0
    %906 = vmatpush1.msra.mxu0 0.0
    %907 = vmatprep.subr.mxu0 0.0
    %908 = vmatpush1.msra.mxu0 0.0
    %909 = vmatprep.subr.mxu0 0.0
    %910 = vmatpush1.msra.mxu0 0.0
    %911 = vmatprep.subr.mxu0 0.0
    %912 = vmatpush1.msra.mxu0 0.0
    %913 = vmatprep.subr.mxu0 0.0
    %914 = vmatpush1.msra.mxu0 0.0
    %915 = vmatprep.subr.mxu0 0.0
    %916 = vmatpush1.msra.mxu0 0.0
    %917 = vmatprep.subr.mxu0 0.0
    %918 = vmatpush1.msra.mxu0 0.0
    %919 = vmatprep.subr.mxu0 0.0
    %920 = vmatpush1.msra.mxu0 0.0
    %921 = vmatprep.subr.mxu0 0.0
    %922 = vmatpush1.msra.mxu0 0.0
    %923 = vmatprep.subr.mxu0 0.0
    %924 = vmatpush1.msra.mxu0 0.0
    %925 = vmatprep.subr.mxu0 0.0
    %926 = vmatpush1.msra.mxu0 0.0
    %927 = vmatprep.subr.mxu0 0.0
    %928 = vmatpush1.msra.mxu0 0.0
    %929 = vmatprep.subr.mxu0 0.0
    %930 = vmatpush1.msra.mxu0 0.0
    %931 = vmatprep.subr.mxu0 0.0
    %932 = vmatpush1.msra.mxu0 0.0
    %933 = vmatprep.subr.mxu0 0.0
    %934 = vmatpush1.msra.mxu0 0.0
    %935 = vmatprep.subr.mxu0 0.0
    %936 = vmatpush1.msra.mxu0 0.0
    %937 = vmatprep.subr.mxu0 0.0
    %938 = vmatpush1.msra.mxu0 0.0
    %939 = vmatprep.subr.mxu0 0.0
    %940 = vmatpush1.msra.mxu0 0.0
    %941 = vmatprep.subr.mxu0 0.0
    %942 = vmatpush1.msra.mxu0 0.0
    %943 = vmatprep.subr.mxu0 0.0
    %944 = vmatpush1.msra.mxu0 0.0
    %945 = vmatprep.subr.mxu0 0.0
    %946 = vmatpush1.msra.mxu0 0.0
    %947 = vmatprep.mubr.f32.mxu0 0.0
    %948 = vmatmul.mubr.f32.gmra.mrb[0].mxu0 %v881
    %v949 = vpop.f32.mrb[0].mxu0
    %v950 = vadd.f32 0.0, %v949
    %v951 = vpop.f32.mrb[0].mxu0
    %952 = vdwg.mxu0
    %v953 = vadd.f32 %v880, %v950
    %v954 = vxor.u32 %v953, 2147483648
    %v955 = vmul.f32 %v954, 1.442695
    %v956 = vpow.pop %v955
    %v957 = vadd.f32 %v956, 1.0
    %v958 = vrcp.pop %v957
    %v959 = vmul.f32 1.0, %v958
    %v960 = vtanh.pop %v953
    %v961 = vmul.f32 %v959, %v868
    %963 = vrot.lane.b32.xlu0 %v960, 64
    %v964 = vpop.permute.xlu0 %963
    %v966 = vmul.f32 %v959, %v964
    %968 = vrot.lane.b32.xlu0 %v966, 32
    %v969 = vpop.permute.xlu0 %968
    %v971 = vadd.f32 %v961, %v969
    %v972 = vtanh.pop %v971
    %974 = vrot.lane.b32.xlu0 %v972, 64
    %v975 = vpop.permute.xlu0 %974
    %v977 = vmul.f32 %v959, %v975
    %979 = vrot.lane.b32.xlu0 %v977, 32
    %v980 = vpop.permute.xlu0 %979
    %982 = vst.msk [vmem:[#allocation2 + $0xe] sm:$0x3] %vm260, %v980
    loop: start=0, step=1, limit=5
    $region42: #{residual_lstm_forward.1} parent=1 // loop_pre_header
      _
    $region43: #{residual_lstm_forward.1} parent=1 // loop_header
      %s984 = sphi 0, %s988
      %p985 = scmp.ge.s32.totalorder %s984, 5
    $region44: #{residual_lstm_forward.1} parent=1 // loop_header_branch
      %987 = sbr.rel (%p985) target = $region48
    $region45: #{residual_lstm_forward.1} parent=1 // loop_body
      %v989 = vld [vmem:[#allocation2] sm:$0xff]
      %v990 = vld [vmem:[#allocation2 + $0x8] sm:$0xff]
      %s991 = smul.u32 %s984, 32
      %s992 = scalar_lea.vmem [#allocation4], %s991
      %v993 = vld [vmem:[%s992] sm:$0xff]
      %v994 = vld [vmem:[%s992 + $0x8] sm:$0xff]
      %v995 = vld [vmem:[%s992 + $0x10] sm:$0xff]
      %v996 = vld [vmem:[%s992 + $0x18] sm:$0xff]
      %s997 = sadd.s32 %s984, 1
      %s998 = scalar_lea.vmem %s4, %s997
      %v999 = vld [vmem:[%s998] sm:$0x1]
      %v1001 = vlaneseq
      %v1002 = vshrl.u32 %v1001, 7
      %v1003 = vsub.s32 0, %v1002
      %v1004 = vrot.slane %v999, %v1003
      %v1007 = vsel %vm157, %v989, 0
      %v1010 = vsel %vm157, %v990, 0
      %1012 = vmatprep.subr.mxu0 0.0
      %1013 = vmatpush1.msra.mxu0 %v993
      %1014 = vmatprep.subr.mxu0 0.0
      %1015 = vmatpush1.msra.mxu0 %v994
      %1016 = vmatprep.subr.mxu0 0.0
      %1017 = vmatpush1.msra.mxu0 %v995
      %1018 = vmatprep.subr.mxu0 0.0
      %1019 = vmatpush1.msra.mxu0 %v996
      %1020 = vmatprep.subr.mxu0 0.0
      %1021 = vmatpush1.msra.mxu0 0.0
      %1022 = vmatprep.subr.mxu0 0.0
      %1023 = vmatpush1.msra.mxu0 0.0
      %1024 = vmatprep.subr.mxu0 0.0
      %1025 = vmatpush1.msra.mxu0 0.0
      %1026 = vmatprep.subr.mxu0 0.0
      %1027 = vmatpush1.msra.mxu0 0.0
      %1028 = vmatprep.subr.mxu0 0.0
      %1029 = vmatpush1.msra.mxu0 0.0
      %1030 = vmatprep.subr.mxu0 0.0
      %1031 = vmatpush1.msra.mxu0 0.0
      %1032 = vmatprep.subr.mxu0 0.0
      %1033 = vmatpush1.msra.mxu0 0.0
      %1034 = vmatprep.subr.mxu0 0.0
      %1035 = vmatpush1.msra.mxu0 0.0
      %1036 = vmatprep.subr.mxu0 0.0
      %1037 = vmatpush1.msra.mxu0 0.0
      %1038 = vmatprep.subr.mxu0 0.0
      %1039 = vmatpush1.msra.mxu0 0.0
      %1040 = vmatprep.subr.mxu0 0.0
      %1041 = vmatpush1.msra.mxu0 0.0
      %1042 = vmatprep.subr.mxu0 0.0
      %1043 = vmatpush1.msra.mxu0 0.0
      %1044 = vmatprep.subr.mxu0 0.0
      %1045 = vmatpush1.msra.mxu0 0.0
      %1046 = vmatprep.subr.mxu0 0.0
      %1047 = vmatpush1.msra.mxu0 0.0
      %1048 = vmatprep.subr.mxu0 0.0
      %1049 = vmatpush1.msra.mxu0 0.0
      %1050 = vmatprep.subr.mxu0 0.0
      %1051 = vmatpush1.msra.mxu0 0.0
      %1052 = vmatprep.subr.mxu0 0.0
      %1053 = vmatpush1.msra.mxu0 0.0
      %1054 = vmatprep.subr.mxu0 0.0
      %1055 = vmatpush1.msra.mxu0 0.0
      %1056 = vmatprep.subr.mxu0 0.0
      %1057 = vmatpush1.msra.mxu0 0.0
      %1058 = vmatprep.subr.mxu0 0.0
      %1059 = vmatpush1.msra.mxu0 0.0
      %1060 = vmatprep.subr.mxu0 0.0
      %1061 = vmatpush1.msra.mxu0 0.0
      %1062 = vmatprep.subr.mxu0 0.0
      %1063 = vmatpush1.msra.mxu0 0.0
      %1064 = vmatprep.subr.mxu0 0.0
      %1065 = vmatpush1.msra.mxu0 0.0
      %1066 = vmatprep.subr.mxu0 0.0
      %1067 = vmatpush1.msra.mxu0 0.0
      %1068 = vmatprep.subr.mxu0 0.0
      %1069 = vmatpush1.msra.mxu0 0.0
      %1070 = vmatprep.subr.mxu0 0.0
      %1071 = vmatpush1.msra.mxu0 0.0
      %1072 = vmatprep.subr.mxu0 0.0
      %1073 = vmatpush1.msra.mxu0 0.0
      %1074 = vmatprep.subr.mxu0 0.0
      %1075 = vmatpush1.msra.mxu0 0.0
      %1076 = vmatprep.mubr.f32.mxu0 0.0
      %1077 = vmatmul.mubr.f32.gmra.mrb[0].mxu0 %v1007
      %v1078 = vpop.f32.mrb[0].mxu0
      %v1079 = vadd.f32 %v1004, %v1078
      %v1080 = vpop.f32.mrb[0].mxu0
      %1081 = vmatprep.mubr.f32.mxu0 0.0
      %1082 = vmatmul.mubr.f32.gmra.mrb[0].mxu0 %v1010
      %v1083 = vpop.f32.mrb[0].mxu0
      %v1084 = vadd.f32 %v1004, %v1083
      %v1085 = vpop.f32.mrb[0].mxu0
      %1086 = vdwg.mxu0
      %1087 = vst [vmem:[#allocation3] sm:$0xff] %v1079
      %1088 = vst [vmem:[#allocation3 + $0x8] sm:$0xff] %v1084
      %s1089 = smul.u32 %s997, 32
      %s1090 = scalar_lea.vmem [#allocation7], %s1089
      %v1091 = vld [vmem:[%s1090] sm:$0xff]
      %v1092 = vld [vmem:[%s1090 + $0x8] sm:$0xff]
      %v1093 = vld [vmem:[%s1090 + $0x10] sm:$0xff]
      %v1094 = vld [vmem:[%s1090 + $0x18] sm:$0xff]
      %v1095 = vld [vmem:[#allocation3] sm:$0x3]
      %1096 = vmatprep.subr.mxu0 0.0
      %1097 = vmatpush1.msra.mxu0 %v1091
      %1098 = vmatprep.subr.mxu0 0.0
      %1099 = vmatpush1.msra.mxu0 %v1092
      %1100 = vmatprep.subr.mxu0 0.0
      %1101 = vmatpush1.msra.mxu0 %v1093
      %1102 = vmatprep.subr.mxu0 0.0
      %1103 = vmatpush1.msra.mxu0 %v1094
      %1104 = vmatprep.subr.mxu0 0.0
      %1105 = vmatpush1.msra.mxu0 0.0
      %1106 = vmatprep.subr.mxu0 0.0
      %1107 = vmatpush1.msra.mxu0 0.0
      %1108 = vmatprep.subr.mxu0 0.0
      %1109 = vmatpush1.msra.mxu0 0.0
      %1110 = vmatprep.subr.mxu0 0.0
      %1111 = vmatpush1.msra.mxu0 0.0
      %1112 = vmatprep.subr.mxu0 0.0
      %1113 = vmatpush1.msra.mxu0 0.0
      %1114 = vmatprep.subr.mxu0 0.0
      %1115 = vmatpush1.msra.mxu0 0.0
      %1116 = vmatprep.subr.mxu0 0.0
      %1117 = vmatpush1.msra.mxu0 0.0
      %1118 = vmatprep.subr.mxu0 0.0
      %1119 = vmatpush1.msra.mxu0 0.0
      %1120 = vmatprep.subr.mxu0 0.0
      %1121 = vmatpush1.msra.mxu0 0.0
      %1122 = vmatprep.subr.mxu0 0.0
      %1123 = vmatpush1.msra.mxu0 0.0
      %1124 = vmatprep.subr.mxu0 0.0
      %1125 = vmatpush1.msra.mxu0 0.0
      %1126 = vmatprep.subr.mxu0 0.0
      %1127 = vmatpush1.msra.mxu0 0.0
      %1128 = vmatprep.subr.mxu0 0.0
      %1129 = vmatpush1.msra.mxu0 0.0
      %1130 = vmatprep.subr.mxu0 0.0
      %1131 = vmatpush1.msra.mxu0 0.0
      %1132 = vmatprep.subr.mxu0 0.0
      %1133 = vmatpush1.msra.mxu0 0.0
      %1134 = vmatprep.subr.mxu0 0.0
      %1135 = vmatpush1.msra.mxu0 0.0
      %1136 = vmatprep.subr.mxu0 0.0
      %1137 = vmatpush1.msra.mxu0 0.0
      %1138 = vmatprep.subr.mxu0 0.0
      %1139 = vmatpush1.msra.mxu0 0.0
      %1140 = vmatprep.subr.mxu0 0.0
      %1141 = vmatpush1.msra.mxu0 0.0
      %1142 = vmatprep.subr.mxu0 0.0
      %1143 = vmatpush1.msra.mxu0 0.0
      %1144 = vmatprep.subr.mxu0 0.0
      %1145 = vmatpush1.msra.mxu0 0.0
      %1146 = vmatprep.subr.mxu0 0.0
      %1147 = vmatpush1.msra.mxu0 0.0
      %1148 = vmatprep.subr.mxu0 0.0
      %1149 = vmatpush1.msra.mxu0 0.0
      %1150 = vmatprep.subr.mxu0 0.0
      %1151 = vmatpush1.msra.mxu0 0.0
      %1152 = vmatprep.subr.mxu0 0.0
      %1153 = vmatpush1.msra.mxu0 0.0
      %1154 = vmatprep.subr.mxu0 0.0
      %1155 = vmatpush1.msra.mxu0 0.0
      %1156 = vmatprep.subr.mxu0 0.0
      %1157 = vmatpush1.msra.mxu0 0.0
      %1158 = vmatprep.subr.mxu0 0.0
      %1159 = vmatpush1.msra.mxu0 0.0
      %1160 = vmatprep.mubr.f32.mxu0 0.0
      %1161 = vmatmul.mubr.f32.gmra.mrb[0].mxu0 %v159
      %v1162 = vpop.f32.mrb[0].mxu0
      %v1163 = vadd.f32 0.0, %v1162
      %v1164 = vpop.f32.mrb[0].mxu0
      %1165 = vdwg.mxu0
      %v1166 = vadd.f32 %v1095, %v1163
      %v1167 = vxor.u32 %v1166, 2147483648
      %v1168 = vmul.f32 %v1167, 1.442695
      %v1169 = vpow.pop %v1168
      %v1170 = vadd.f32 %v1169, 1.0
      %v1171 = vrcp.pop %v1170
      %v1172 = vmul.f32 1.0, %v1171
      %v1173 = vtanh.pop %v1166
      %v1174 = vmul.f32 %v1172, 0.0
      %1176 = vrot.lane.b32.xlu0 %v1173, 64
      %v1177 = vpop.permute.xlu0 %1176
      %v1179 = vmul.f32 %v1172, %v1177
      %1181 = vrot.lane.b32.xlu0 %v1179, 32
      %v1182 = vpop.permute.xlu0 %1181
      %v1184 = vadd.f32 %v1174, %v1182
      %v1185 = vtanh.pop %v1184
      %1187 = vrot.lane.b32.xlu0 %v1185, 64
      %v1188 = vpop.permute.xlu0 %1187
      %v1190 = vmul.f32 %v1172, %v1188
      %1192 = vrot.lane.b32.xlu0 %v1190, 32
      %v1193 = vpop.permute.xlu0 %1192
      %1195 = vst.msk [vmem:[#allocation2] sm:$0x3] %vm260, %v1193
      %v1196 = vld [vmem:[#allocation3 + $0x2] sm:$0x3]
      %v1197 = vsel %vm157, %v1193, 0
      %1199 = vmatprep.subr.mxu0 0.0
      %1200 = vmatpush1.msra.mxu0 %v1091
      %1201 = vmatprep.subr.mxu0 0.0
      %1202 = vmatpush1.msra.mxu0 %v1092
      %1203 = vmatprep.subr.mxu0 0.0
      %1204 = vmatpush1.msra.mxu0 %v1093
      %1205 = vmatprep.subr.mxu0 0.0
      %1206 = vmatpush1.msra.mxu0 %v1094
      %1207 = vmatprep.subr.mxu0 0.0
      %1208 = vmatpush1.msra.mxu0 0.0
      %1209 = vmatprep.subr.mxu0 0.0
      %1210 = vmatpush1.msra.mxu0 0.0
      %1211 = vmatprep.subr.mxu0 0.0
      %1212 = vmatpush1.msra.mxu0 0.0
      %1213 = vmatprep.subr.mxu0 0.0
      %1214 = vmatpush1.msra.mxu0 0.0
      %1215 = vmatprep.subr.mxu0 0.0
      %1216 = vmatpush1.msra.mxu0 0.0
      %1217 = vmatprep.subr.mxu0 0.0
      %1218 = vmatpush1.msra.mxu0 0.0
      %1219 = vmatprep.subr.mxu0 0.0
      %1220 = vmatpush1.msra.mxu0 0.0
      %1221 = vmatprep.subr.mxu0 0.0
      %1222 = vmatpush1.msra.mxu0 0.0
      %1223 = vmatprep.subr.mxu0 0.0
      %1224 = vmatpush1.msra.mxu0 0.0
      %1225 = vmatprep.subr.mxu0 0.0
      %1226 = vmatpush1.msra.mxu0 0.0
      %1227 = vmatprep.subr.mxu0 0.0
      %1228 = vmatpush1.msra.mxu0 0.0
      %1229 = vmatprep.subr.mxu0 0.0
      %1230 = vmatpush1.msra.mxu0 0.0
      %1231 = vmatprep.subr.mxu0 0.0
      %1232 = vmatpush1.msra.mxu0 0.0
      %1233 = vmatprep.subr.mxu0 0.0
      %1234 = vmatpush1.msra.mxu0 0.0
      %1235 = vmatprep.subr.mxu0 0.0
      %1236 = vmatpush1.msra.mxu0 0.0
      %1237 = vmatprep.subr.mxu0 0.0
      %1238 = vmatpush1.msra.mxu0 0.0
      %1239 = vmatprep.subr.mxu0 0.0
      %1240 = vmatpush1.msra.mxu0 0.0
      %1241 = vmatprep.subr.mxu0 0.0
      %1242 = vmatpush1.msra.mxu0 0.0
      %1243 = vmatprep.subr.mxu0 0.0
      %1244 = vmatpush1.msra.mxu0 0.0
      %1245 = vmatprep.subr.mxu0 0.0
      %1246 = vmatpush1.msra.mxu0 0.0
      %1247 = vmatprep.subr.mxu0 0.0
      %1248 = vmatpush1.msra.mxu0 0.0
      %1249 = vmatprep.subr.mxu0 0.0
      %1250 = vmatpush1.msra.mxu0 0.0
      %1251 = vmatprep.subr.mxu0 0.0
      %1252 = vmatpush1.msra.mxu0 0.0
      %1253 = vmatprep.subr.mxu0 0.0
      %1254 = vmatpush1.msra.mxu0 0.0
      %1255 = vmatprep.subr.mxu0 0.0
      %1256 = vmatpush1.msra.mxu0 0.0
      %1257 = vmatprep.subr.mxu0 0.0
      %1258 = vmatpush1.msra.mxu0 0.0
      %1259 = vmatprep.subr.mxu0 0.0
      %1260 = vmatpush1.msra.mxu0 0.0
      %1261 = vmatprep.subr.mxu0 0.0
      %1262 = vmatpush1.msra.mxu0 0.0
      %1263 = vmatprep.mubr.f32.mxu0 0.0
      %1264 = vmatmul.mubr.f32.gmra.mrb[0].mxu0 %v1197
      %v1265 = vpop.f32.mrb[0].mxu0
      %v1266 = vadd.f32 0.0, %v1265
      %v1267 = vpop.f32.mrb[0].mxu0
      %1268 = vdwg.mxu0
      %v1269 = vadd.f32 %v1196, %v1266
      %v1270 = vxor.u32 %v1269, 2147483648
      %v1271 = vmul.f32 %v1270, 1.442695
      %v1272 = vpow.pop %v1271
      %v1273 = vadd.f32 %v1272, 1.0
      %v1274 = vrcp.pop %v1273
      %v1275 = vmul.f32 1.0, %v1274
      %v1276 = vtanh.pop %v1269
      %v1277 = vmul.f32 %v1275, %v1184
      %1279 = vrot.lane.b32.xlu0 %v1276, 64
      %v1280 = vpop.permute.xlu0 %1279
      %v1282 = vmul.f32 %v1275, %v1280
      %1284 = vrot.lane.b32.xlu0 %v1282, 32
      %v1285 = vpop.permute.xlu0 %1284
      %v1287 = vadd.f32 %v1277, %v1285
      %v1288 = vtanh.pop %v1287
      %1290 = vrot.lane.b32.xlu0 %v1288, 64
      %v1291 = vpop.permute.xlu0 %1290
      %v1293 = vmul.f32 %v1275, %v1291
      %1295 = vrot.lane.b32.xlu0 %v1293, 32
      %v1296 = vpop.permute.xlu0 %1295
      %1298 = vst.msk [vmem:[#allocation2 + $0x2] sm:$0x3] %vm260, %v1296
      %v1299 = vld [vmem:[#allocation3 + $0x4] sm:$0x3]
      %v1300 = vsel %vm157, %v1296, 0
      %1302 = vmatprep.subr.mxu0 0.0
      %1303 = vmatpush1.msra.mxu0 %v1091
      %1304 = vmatprep.subr.mxu0 0.0
      %1305 = vmatpush1.msra.mxu0 %v1092
      %1306 = vmatprep.subr.mxu0 0.0
      %1307 = vmatpush1.msra.mxu0 %v1093
      %1308 = vmatprep.subr.mxu0 0.0
      %1309 = vmatpush1.msra.mxu0 %v1094
      %1310 = vmatprep.subr.mxu0 0.0
      %1311 = vmatpush1.msra.mxu0 0.0
      %1312 = vmatprep.subr.mxu0 0.0
      %1313 = vmatpush1.msra.mxu0 0.0
      %1314 = vmatprep.subr.mxu0 0.0
      %1315 = vmatpush1.msra.mxu0 0.0
      %1316 = vmatprep.subr.mxu0 0.0
      %1317 = vmatpush1.msra.mxu0 0.0
      %1318 = vmatprep.subr.mxu0 0.0
      %1319 = vmatpush1.msra.mxu0 0.0
      %1320 = vmatprep.subr.mxu0 0.0
      %1321 = vmatpush1.msra.mxu0 0.0
      %1322 = vmatprep.subr.mxu0 0.0
      %1323 = vmatpush1.msra.mxu0 0.0
      %1324 = vmatprep.subr.mxu0 0.0
      %1325 = vmatpush1.msra.mxu0 0.0
      %1326 = vmatprep.subr.mxu0 0.0
      %1327 = vmatpush1.msra.mxu0 0.0
      %1328 = vmatprep.subr.mxu0 0.0
      %1329 = vmatpush1.msra.mxu0 0.0
      %1330 = vmatprep.subr.mxu0 0.0
      %1331 = vmatpush1.msra.mxu0 0.0
      %1332 = vmatprep.subr.mxu0 0.0
      %1333 = vmatpush1.msra.mxu0 0.0
      %1334 = vmatprep.subr.mxu0 0.0
      %1335 = vmatpush1.msra.mxu0 0.0
      %1336 = vmatprep.subr.mxu0 0.0
      %1337 = vmatpush1.msra.mxu0 0.0
      %1338 = vmatprep.subr.mxu0 0.0
      %1339 = vmatpush1.msra.mxu0 0.0
      %1340 = vmatprep.subr.mxu0 0.0
      %1341 = vmatpush1.msra.mxu0 0.0
      %1342 = vmatprep.subr.mxu0 0.0
      %1343 = vmatpush1.msra.mxu0 0.0
      %1344 = vmatprep.subr.mxu0 0.0
      %1345 = vmatpush1.msra.mxu0 0.0
      %1346 = vmatprep.subr.mxu0 0.0
      %1347 = vmatpush1.msra.mxu0 0.0
      %1348 = vmatprep.subr.mxu0 0.0
      %1349 = vmatpush1.msra.mxu0 0.0
      %1350 = vmatprep.subr.mxu0 0.0
      %1351 = vmatpush1.msra.mxu0 0.0
      %1352 = vmatprep.subr.mxu0 0.0
      %1353 = vmatpush1.msra.mxu0 0.0
      %1354 = vmatprep.subr.mxu0 0.0
      %1355 = vmatpush1.msra.mxu0 0.0
      %1356 = vmatprep.subr.mxu0 0.0
      %1357 = vmatpush1.msra.mxu0 0.0
      %1358 = vmatprep.subr.mxu0 0.0
      %1359 = vmatpush1.msra.mxu0 0.0
      %1360 = vmatprep.subr.mxu0 0.0
      %1361 = vmatpush1.msra.mxu0 0.0
      %1362 = vmatprep.subr.mxu0 0.0
      %1363 = vmatpush1.msra.mxu0 0.0
      %1364 = vmatprep.subr.mxu0 0.0
      %1365 = vmatpush1.msra.mxu0 0.0
      %1366 = vmatprep.mubr.f32.mxu0 0.0
      %1367 = vmatmul.mubr.f32.gmra.mrb[0].mxu0 %v1300
      %v1368 = vpop.f32.mrb[0].mxu0
      %v1369 = vadd.f32 0.0, %v1368
      %v1370 = vpop.f32.mrb[0].mxu0
      %1371 = vdwg.mxu0
      %v1372 = vadd.f32 %v1299, %v1369
      %v1373 = vxor.u32 %v1372, 2147483648
      %v1374 = vmul.f32 %v1373, 1.442695
      %v1375 = vpow.pop %v1374
      %v1376 = vadd.f32 %v1375, 1.0
      %v1377 = vrcp.pop %v1376
      %v1378 = vmul.f32 1.0, %v1377
      %v1379 = vtanh.pop %v1372
      %v1380 = vmul.f32 %v1378, %v1287
      %1382 = vrot.lane.b32.xlu0 %v1379, 64
      %v1383 = vpop.permute.xlu0 %1382
      %v1385 = vmul.f32 %v1378, %v1383
      %1387 = vrot.lane.b32.xlu0 %v1385, 32
      %v1388 = vpop.permute.xlu0 %1387
      %v1390 = vadd.f32 %v1380, %v1388
      %v1391 = vtanh.pop %v1390
      %1393 = vrot.lane.b32.xlu0 %v1391, 64
      %v1394 = vpop.permute.xlu0 %1393
      %v1396 = vmul.f32 %v1378, %v1394
      %1398 = vrot.lane.b32.xlu0 %v1396, 32
      %v1399 = vpop.permute.xlu0 %1398
      %1401 = vst.msk [vmem:[#allocation2 + $0x4] sm:$0x3] %vm260, %v1399
      %v1402 = vld [vmem:[#allocation3 + $0x6] sm:$0x3]
      %v1403 = vsel %vm157, %v1399, 0
      %1405 = vmatprep.subr.mxu0 0.0
      %1406 = vmatpush1.msra.mxu0 %v1091
      %1407 = vmatprep.subr.mxu0 0.0
      %1408 = vmatpush1.msra.mxu0 %v1092
      %1409 = vmatprep.subr.mxu0 0.0
      %1410 = vmatpush1.msra.mxu0 %v1093
      %1411 = vmatprep.subr.mxu0 0.0
      %1412 = vmatpush1.msra.mxu0 %v1094
      %1413 = vmatprep.subr.mxu0 0.0
      %1414 = vmatpush1.msra.mxu0 0.0
      %1415 = vmatprep.subr.mxu0 0.0
      %1416 = vmatpush1.msra.mxu0 0.0
      %1417 = vmatprep.subr.mxu0 0.0
      %1418 = vmatpush1.msra.mxu0 0.0
      %1419 = vmatprep.subr.mxu0 0.0
      %1420 = vmatpush1.msra.mxu0 0.0
      %1421 = vmatprep.subr.mxu0 0.0
      %1422 = vmatpush1.msra.mxu0 0.0
      %1423 = vmatprep.subr.mxu0 0.0
      %1424 = vmatpush1.msra.mxu0 0.0
      %1425 = vmatprep.subr.mxu0 0.0
      %1426 = vmatpush1.msra.mxu0 0.0
      %1427 = vmatprep.subr.mxu0 0.0
      %1428 = vmatpush1.msra.mxu0 0.0
      %1429 = vmatprep.subr.mxu0 0.0
      %1430 = vmatpush1.msra.mxu0 0.0
      %1431 = vmatprep.subr.mxu0 0.0
      %1432 = vmatpush1.msra.mxu0 0.0
      %1433 = vmatprep.subr.mxu0 0.0
      %1434 = vmatpush1.msra.mxu0 0.0
      %1435 = vmatprep.subr.mxu0 0.0
      %1436 = vmatpush1.msra.mxu0 0.0
      %1437 = vmatprep.subr.mxu0 0.0
      %1438 = vmatpush1.msra.mxu0 0.0
      %1439 = vmatprep.subr.mxu0 0.0
      %1440 = vmatpush1.msra.mxu0 0.0
      %1441 = vmatprep.subr.mxu0 0.0
      %1442 = vmatpush1.msra.mxu0 0.0
      %1443 = vmatprep.subr.mxu0 0.0
      %1444 = vmatpush1.msra.mxu0 0.0
      %1445 = vmatprep.subr.mxu0 0.0
      %1446 = vmatpush1.msra.mxu0 0.0
      %1447 = vmatprep.subr.mxu0 0.0
      %1448 = vmatpush1.msra.mxu0 0.0
      %1449 = vmatprep.subr.mxu0 0.0
      %1450 = vmatpush1.msra.mxu0 0.0
      %1451 = vmatprep.subr.mxu0 0.0
      %1452 = vmatpush1.msra.mxu0 0.0
      %1453 = vmatprep.subr.mxu0 0.0
      %1454 = vmatpush1.msra.mxu0 0.0
      %1455 = vmatprep.subr.mxu0 0.0
      %1456 = vmatpush1.msra.mxu0 0.0
      %1457 = vmatprep.subr.mxu0 0.0
      %1458 = vmatpush1.msra.mxu0 0.0
      %1459 = vmatprep.subr.mxu0 0.0
      %1460 = vmatpush1.msra.mxu0 0.0
      %1461 = vmatprep.subr.mxu0 0.0
      %1462 = vmatpush1.msra.mxu0 0.0
      %1463 = vmatprep.subr.mxu0 0.0
      %1464 = vmatpush1.msra.mxu0 0.0
      %1465 = vmatprep.subr.mxu0 0.0
      %1466 = vmatpush1.msra.mxu0 0.0
      %1467 = vmatprep.subr.mxu0 0.0
      %1468 = vmatpush1.msra.mxu0 0.0
      %1469 = vmatprep.mubr.f32.mxu0 0.0
      %1470 = vmatmul.mubr.f32.gmra.mrb[0].mxu0 %v1403
      %v1471 = vpop.f32.mrb[0].mxu0
      %v1472 = vadd.f32 0.0, %v1471
      %v1473 = vpop.f32.mrb[0].mxu0
      %1474 = vdwg.mxu0
      %v1475 = vadd.f32 %v1402, %v1472
      %v1476 = vxor.u32 %v1475, 2147483648
      %v1477 = vmul.f32 %v1476, 1.442695
      %v1478 = vpow.pop %v1477
      %v1479 = vadd.f32 %v1478, 1.0
      %v1480 = vrcp.pop %v1479
      %v1481 = vmul.f32 1.0, %v1480
      %v1482 = vtanh.pop %v1475
      %v1483 = vmul.f32 %v1481, %v1390
      %1485 = vrot.lane.b32.xlu0 %v1482, 64
      %v1486 = vpop.permute.xlu0 %1485
      %v1488 = vmul.f32 %v1481, %v1486
      %1490 = vrot.lane.b32.xlu0 %v1488, 32
      %v1491 = vpop.permute.xlu0 %1490
      %v1493 = vadd.f32 %v1483, %v1491
      %v1494 = vtanh.pop %v1493
      %1496 = vrot.lane.b32.xlu0 %v1494, 64
      %v1497 = vpop.permute.xlu0 %1496
      %v1499 = vmul.f32 %v1481, %v1497
      %1501 = vrot.lane.b32.xlu0 %v1499, 32
      %v1502 = vpop.permute.xlu0 %1501
      %1504 = vst.msk [vmem:[#allocation2 + $0x6] sm:$0x3] %vm260, %v1502
      %v1505 = vld [vmem:[#allocation3 + $0x8] sm:$0x3]
      %v1506 = vsel %vm157, %v1502, 0
      %1508 = vmatprep.subr.mxu0 0.0
      %1509 = vmatpush1.msra.mxu0 %v1091
      %1510 = vmatprep.subr.mxu0 0.0
      %1511 = vmatpush1.msra.mxu0 %v1092
      %1512 = vmatprep.subr.mxu0 0.0
      %1513 = vmatpush1.msra.mxu0 %v1093
      %1514 = vmatprep.subr.mxu0 0.0
      %1515 = vmatpush1.msra.mxu0 %v1094
      %1516 = vmatprep.subr.mxu0 0.0
      %1517 = vmatpush1.msra.mxu0 0.0
      %1518 = vmatprep.subr.mxu0 0.0
      %1519 = vmatpush1.msra.mxu0 0.0
      %1520 = vmatprep.subr.mxu0 0.0
      %1521 = vmatpush1.msra.mxu0 0.0
      %1522 = vmatprep.subr.mxu0 0.0
      %1523 = vmatpush1.msra.mxu0 0.0
      %1524 = vmatprep.subr.mxu0 0.0
      %1525 = vmatpush1.msra.mxu0 0.0
      %1526 = vmatprep.subr.mxu0 0.0
      %1527 = vmatpush1.msra.mxu0 0.0
      %1528 = vmatprep.subr.mxu0 0.0
      %1529 = vmatpush1.msra.mxu0 0.0
      %1530 = vmatprep.subr.mxu0 0.0
      %1531 = vmatpush1.msra.mxu0 0.0
      %1532 = vmatprep.subr.mxu0 0.0
      %1533 = vmatpush1.msra.mxu0 0.0
      %1534 = vmatprep.subr.mxu0 0.0
      %1535 = vmatpush1.msra.mxu0 0.0
      %1536 = vmatprep.subr.mxu0 0.0
      %1537 = vmatpush1.msra.mxu0 0.0
      %1538 = vmatprep.subr.mxu0 0.0
      %1539 = vmatpush1.msra.mxu0 0.0
      %1540 = vmatprep.subr.mxu0 0.0
      %1541 = vmatpush1.msra.mxu0 0.0
      %1542 = vmatprep.subr.mxu0 0.0
      %1543 = vmatpush1.msra.mxu0 0.0
      %1544 = vmatprep.subr.mxu0 0.0
      %1545 = vmatpush1.msra.mxu0 0.0
      %1546 = vmatprep.subr.mxu0 0.0
      %1547 = vmatpush1.msra.mxu0 0.0
      %1548 = vmatprep.subr.mxu0 0.0
      %1549 = vmatpush1.msra.mxu0 0.0
      %1550 = vmatprep.subr.mxu0 0.0
      %1551 = vmatpush1.msra.mxu0 0.0
      %1552 = vmatprep.subr.mxu0 0.0
      %1553 = vmatpush1.msra.mxu0 0.0
      %1554 = vmatprep.subr.mxu0 0.0
      %1555 = vmatpush1.msra.mxu0 0.0
      %1556 = vmatprep.subr.mxu0 0.0
      %1557 = vmatpush1.msra.mxu0 0.0
      %1558 = vmatprep.subr.mxu0 0.0
      %1559 = vmatpush1.msra.mxu0 0.0
      %1560 = vmatprep.subr.mxu0 0.0
      %1561 = vmatpush1.msra.mxu0 0.0
      %1562 = vmatprep.subr.mxu0 0.0
      %1563 = vmatpush1.msra.mxu0 0.0
      %1564 = vmatprep.subr.mxu0 0.0
      %1565 = vmatpush1.msra.mxu0 0.0
      %1566 = vmatprep.subr.mxu0 0.0
      %1567 = vmatpush1.msra.mxu0 0.0
      %1568 = vmatprep.subr.mxu0 0.0
      %1569 = vmatpush1.msra.mxu0 0.0
      %1570 = vmatprep.subr.mxu0 0.0
      %1571 = vmatpush1.msra.mxu0 0.0
      %1572 = vmatprep.mubr.f32.mxu0 0.0
      %1573 = vmatmul.mubr.f32.gmra.mrb[0].mxu0 %v1506
      %v1574 = vpop.f32.mrb[0].mxu0
      %v1575 = vadd.f32 0.0, %v1574
      %v1576 = vpop.f32.mrb[0].mxu0
      %1577 = vdwg.mxu0
      %v1578 = vadd.f32 %v1505, %v1575
      %v1579 = vxor.u32 %v1578, 2147483648
      %v1580 = vmul.f32 %v1579, 1.442695
      %v1581 = vpow.pop %v1580
      %v1582 = vadd.f32 %v1581, 1.0
      %v1583 = vrcp.pop %v1582
      %v1584 = vmul.f32 1.0, %v1583
      %v1585 = vtanh.pop %v1578
      %v1586 = vmul.f32 %v1584, %v1493
      %1588 = vrot.lane.b32.xlu0 %v1585, 64
      %v1589 = vpop.permute.xlu0 %1588
      %v1591 = vmul.f32 %v1584, %v1589
      %1593 = vrot.lane.b32.xlu0 %v1591, 32
      %v1594 = vpop.permute.xlu0 %1593
      %v1596 = vadd.f32 %v1586, %v1594
      %v1597 = vtanh.pop %v1596
      %1599 = vrot.lane.b32.xlu0 %v1597, 64
      %v1600 = vpop.permute.xlu0 %1599
      %v1602 = vmul.f32 %v1584, %v1600
      %1604 = vrot.lane.b32.xlu0 %v1602, 32
      %v1605 = vpop.permute.xlu0 %1604
      %1607 = vst.msk [vmem:[#allocation2 + $0x8] sm:$0x3] %vm260, %v1605
      %v1608 = vld [vmem:[#allocation3 + $0xa] sm:$0x3]
      %v1609 = vsel %vm157, %v1605, 0
      %1611 = vmatprep.subr.mxu0 0.0
      %1612 = vmatpush1.msra.mxu0 %v1091
      %1613 = vmatprep.subr.mxu0 0.0
      %1614 = vmatpush1.msra.mxu0 %v1092
      %1615 = vmatprep.subr.mxu0 0.0
      %1616 = vmatpush1.msra.mxu0 %v1093
      %1617 = vmatprep.subr.mxu0 0.0
      %1618 = vmatpush1.msra.mxu0 %v1094
      %1619 = vmatprep.subr.mxu0 0.0
      %1620 = vmatpush1.msra.mxu0 0.0
      %1621 = vmatprep.subr.mxu0 0.0
      %1622 = vmatpush1.msra.mxu0 0.0
      %1623 = vmatprep.subr.mxu0 0.0
      %1624 = vmatpush1.msra.mxu0 0.0
      %1625 = vmatprep.subr.mxu0 0.0
      %1626 = vmatpush1.msra.mxu0 0.0
      %1627 = vmatprep.subr.mxu0 0.0
      %1628 = vmatpush1.msra.mxu0 0.0
      %1629 = vmatprep.subr.mxu0 0.0
      %1630 = vmatpush1.msra.mxu0 0.0
      %1631 = vmatprep.subr.mxu0 0.0
      %1632 = vmatpush1.msra.mxu0 0.0
      %1633 = vmatprep.subr.mxu0 0.0
      %1634 = vmatpush1.msra.mxu0 0.0
      %1635 = vmatprep.subr.mxu0 0.0
      %1636 = vmatpush1.msra.mxu0 0.0
      %1637 = vmatprep.subr.mxu0 0.0
      %1638 = vmatpush1.msra.mxu0 0.0
      %1639 = vmatprep.subr.mxu0 0.0
      %1640 = vmatpush1.msra.mxu0 0.0
      %1641 = vmatprep.subr.mxu0 0.0
      %1642 = vmatpush1.msra.mxu0 0.0
      %1643 = vmatprep.subr.mxu0 0.0
      %1644 = vmatpush1.msra.mxu0 0.0
      %1645 = vmatprep.subr.mxu0 0.0
      %1646 = vmatpush1.msra.mxu0 0.0
      %1647 = vmatprep.subr.mxu0 0.0
      %1648 = vmatpush1.msra.mxu0 0.0
      %1649 = vmatprep.subr.mxu0 0.0
      %1650 = vmatpush1.msra.mxu0 0.0
      %1651 = vmatprep.subr.mxu0 0.0
      %1652 = vmatpush1.msra.mxu0 0.0
      %1653 = vmatprep.subr.mxu0 0.0
      %1654 = vmatpush1.msra.mxu0 0.0
      %1655 = vmatprep.subr.mxu0 0.0
      %1656 = vmatpush1.msra.mxu0 0.0
      %1657 = vmatprep.subr.mxu0 0.0
      %1658 = vmatpush1.msra.mxu0 0.0
      %1659 = vmatprep.subr.mxu0 0.0
      %1660 = vmatpush1.msra.mxu0 0.0
      %1661 = vmatprep.subr.mxu0 0.0
      %1662 = vmatpush1.msra.mxu0 0.0
      %1663 = vmatprep.subr.mxu0 0.0
      %1664 = vmatpush1.msra.mxu0 0.0
      %1665 = vmatprep.subr.mxu0 0.0
      %1666 = vmatpush1.msra.mxu0 0.0
      %1667 = vmatprep.subr.mxu0 0.0
      %1668 = vmatpush1.msra.mxu0 0.0
      %1669 = vmatprep.subr.mxu0 0.0
      %1670 = vmatpush1.msra.mxu0 0.0
      %1671 = vmatprep.subr.mxu0 0.0
      %1672 = vmatpush1.msra.mxu0 0.0
      %1673 = vmatprep.subr.mxu0 0.0
      %1674 = vmatpush1.msra.mxu0 0.0
      %1675 = vmatprep.mubr.f32.mxu0 0.0
      %1676 = vmatmul.mubr.f32.gmra.mrb[0].mxu0 %v1609
      %v1677 = vpop.f32.mrb[0].mxu0
      %v1678 = vadd.f32 0.0, %v1677
      %v1679 = vpop.f32.mrb[0].mxu0
      %1680 = vdwg.mxu0
      %v1681 = vadd.f32 %v1608, %v1678
      %v1682 = vxor.u32 %v1681, 2147483648
      %v1683 = vmul.f32 %v1682, 1.442695
      %v1684 = vpow.pop %v1683
      %v1685 = vadd.f32 %v1684, 1.0
      %v1686 = vrcp.pop %v1685
      %v1687 = vmul.f32 1.0, %v1686
      %v1688 = vtanh.pop %v1681
      %v1689 = vmul.f32 %v1687, %v1596
      %1691 = vrot.lane.b32.xlu0 %v1688, 64
      %v1692 = vpop.permute.xlu0 %1691
      %v1694 = vmul.f32 %v1687, %v1692
      %1696 = vrot.lane.b32.xlu0 %v1694, 32
      %v1697 = vpop.permute.xlu0 %1696
      %v1699 = vadd.f32 %v1689, %v1697
      %v1700 = vtanh.pop %v1699
      %1702 = vrot.lane.b32.xlu0 %v1700, 64
      %v1703 = vpop.permute.xlu0 %1702
      %v1705 = vmul.f32 %v1687, %v1703
      %1707 = vrot.lane.b32.xlu0 %v1705, 32
      %v1708 = vpop.permute.xlu0 %1707
      %1710 = vst.msk [vmem:[#allocation2 + $0xa] sm:$0x3] %vm260, %v1708
      %v1711 = vld [vmem:[#allocation3 + $0xc] sm:$0x3]
      %v1712 = vsel %vm157, %v1708, 0
      %1714 = vmatprep.subr.mxu0 0.0
      %1715 = vmatpush1.msra.mxu0 %v1091
      %1716 = vmatprep.subr.mxu0 0.0
      %1717 = vmatpush1.msra.mxu0 %v1092
      %1718 = vmatprep.subr.mxu0 0.0
      %1719 = vmatpush1.msra.mxu0 %v1093
      %1720 = vmatprep.subr.mxu0 0.0
      %1721 = vmatpush1.msra.mxu0 %v1094
      %1722 = vmatprep.subr.mxu0 0.0
      %1723 = vmatpush1.msra.mxu0 0.0
      %1724 = vmatprep.subr.mxu0 0.0
      %1725 = vmatpush1.msra.mxu0 0.0
      %1726 = vmatprep.subr.mxu0 0.0
      %1727 = vmatpush1.msra.mxu0 0.0
      %1728 = vmatprep.subr.mxu0 0.0
      %1729 = vmatpush1.msra.mxu0 0.0
      %1730 = vmatprep.subr.mxu0 0.0
      %1731 = vmatpush1.msra.mxu0 0.0
      %1732 = vmatprep.subr.mxu0 0.0
      %1733 = vmatpush1.msra.mxu0 0.0
      %1734 = vmatprep.subr.mxu0 0.0
      %1735 = vmatpush1.msra.mxu0 0.0
      %1736 = vmatprep.subr.mxu0 0.0
      %1737 = vmatpush1.msra.mxu0 0.0
      %1738 = vmatprep.subr.mxu0 0.0
      %1739 = vmatpush1.msra.mxu0 0.0
      %1740 = vmatprep.subr.mxu0 0.0
      %1741 = vmatpush1.msra.mxu0 0.0
      %1742 = vmatprep.subr.mxu0 0.0
      %1743 = vmatpush1.msra.mxu0 0.0
      %1744 = vmatprep.subr.mxu0 0.0
      %1745 = vmatpush1.msra.mxu0 0.0
      %1746 = vmatprep.subr.mxu0 0.0
      %1747 = vmatpush1.msra.mxu0 0.0
      %1748 = vmatprep.subr.mxu0 0.0
      %1749 = vmatpush1.msra.mxu0 0.0
      %1750 = vmatprep.subr.mxu0 0.0
      %1751 = vmatpush1.msra.mxu0 0.0
      %1752 = vmatprep.subr.mxu0 0.0
      %1753 = vmatpush1.msra.mxu0 0.0
      %1754 = vmatprep.subr.mxu0 0.0
      %1755 = vmatpush1.msra.mxu0 0.0
      %1756 = vmatprep.subr.mxu0 0.0
      %1757 = vmatpush1.msra.mxu0 0.0
      %1758 = vmatprep.subr.mxu0 0.0
      %1759 = vmatpush1.msra.mxu0 0.0
      %1760 = vmatprep.subr.mxu0 0.0
      %1761 = vmatpush1.msra.mxu0 0.0
      %1762 = vmatprep.subr.mxu0 0.0
      %1763 = vmatpush1.msra.mxu0 0.0
      %1764 = vmatprep.subr.mxu0 0.0
      %1765 = vmatpush1.msra.mxu0 0.0
      %1766 = vmatprep.subr.mxu0 0.0
      %1767 = vmatpush1.msra.mxu0 0.0
      %1768 = vmatprep.subr.mxu0 0.0
      %1769 = vmatpush1.msra.mxu0 0.0
      %1770 = vmatprep.subr.mxu0 0.0
      %1771 = vmatpush1.msra.mxu0 0.0
      %1772 = vmatprep.subr.mxu0 0.0
      %1773 = vmatpush1.msra.mxu0 0.0
      %1774 = vmatprep.subr.mxu0 0.0
      %1775 = vmatpush1.msra.mxu0 0.0
      %1776 = vmatprep.subr.mxu0 0.0
      %1777 = vmatpush1.msra.mxu0 0.0
      %1778 = vmatprep.mubr.f32.mxu0 0.0
      %1779 = vmatmul.mubr.f32.gmra.mrb[0].mxu0 %v1712
      %v1780 = vpop.f32.mrb[0].mxu0
      %v1781 = vadd.f32 0.0, %v1780
      %v1782 = vpop.f32.mrb[0].mxu0
      %1783 = vdwg.mxu0
      %v1784 = vadd.f32 %v1711, %v1781
      %v1785 = vxor.u32 %v1784, 2147483648
      %v1786 = vmul.f32 %v1785, 1.442695
      %v1787 = vpow.pop %v1786
      %v1788 = vadd.f32 %v1787, 1.0
      %v1789 = vrcp.pop %v1788
      %v1790 = vmul.f32 1.0, %v1789
      %v1791 = vtanh.pop %v1784
      %v1792 = vmul.f32 %v1790, %v1699
      %1794 = vrot.lane.b32.xlu0 %v1791, 64
      %v1795 = vpop.permute.xlu0 %1794
      %v1797 = vmul.f32 %v1790, %v1795
      %1799 = vrot.lane.b32.xlu0 %v1797, 32
      %v1800 = vpop.permute.xlu0 %1799
      %v1802 = vadd.f32 %v1792, %v1800
      %v1803 = vtanh.pop %v1802
      %1805 = vrot.lane.b32.xlu0 %v1803, 64
      %v1806 = vpop.permute.xlu0 %1805
      %v1808 = vmul.f32 %v1790, %v1806
      %1810 = vrot.lane.b32.xlu0 %v1808, 32
      %v1811 = vpop.permute.xlu0 %1810
      %1813 = vst.msk [vmem:[#allocation2 + $0xc] sm:$0x3] %vm260, %v1811
      %v1814 = vld [vmem:[#allocation3 + $0xe] sm:$0x3]
      %v1815 = vsel %vm157, %v1811, 0
      %1817 = vmatprep.subr.mxu0 0.0
      %1818 = vmatpush1.msra.mxu0 %v1091
      %1819 = vmatprep.subr.mxu0 0.0
      %1820 = vmatpush1.msra.mxu0 %v1092
      %1821 = vmatprep.subr.mxu0 0.0
      %1822 = vmatpush1.msra.mxu0 %v1093
      %1823 = vmatprep.subr.mxu0 0.0
      %1824 = vmatpush1.msra.mxu0 %v1094
      %1825 = vmatprep.subr.mxu0 0.0
      %1826 = vmatpush1.msra.mxu0 0.0
      %1827 = vmatprep.subr.mxu0 0.0
      %1828 = vmatpush1.msra.mxu0 0.0
      %1829 = vmatprep.subr.mxu0 0.0
      %1830 = vmatpush1.msra.mxu0 0.0
      %1831 = vmatprep.subr.mxu0 0.0
      %1832 = vmatpush1.msra.mxu0 0.0
      %1833 = vmatprep.subr.mxu0 0.0
      %1834 = vmatpush1.msra.mxu0 0.0
      %1835 = vmatprep.subr.mxu0 0.0
      %1836 = vmatpush1.msra.mxu0 0.0
      %1837 = vmatprep.subr.mxu0 0.0
      %1838 = vmatpush1.msra.mxu0 0.0
      %1839 = vmatprep.subr.mxu0 0.0
      %1840 = vmatpush1.msra.mxu0 0.0
      %1841 = vmatprep.subr.mxu0 0.0
      %1842 = vmatpush1.msra.mxu0 0.0
      %1843 = vmatprep.subr.mxu0 0.0
      %1844 = vmatpush1.msra.mxu0 0.0
      %1845 = vmatprep.subr.mxu0 0.0
      %1846 = vmatpush1.msra.mxu0 0.0
      %1847 = vmatprep.subr.mxu0 0.0
      %1848 = vmatpush1.msra.mxu0 0.0
      %1849 = vmatprep.subr.mxu0 0.0
      %1850 = vmatpush1.msra.mxu0 0.0
      %1851 = vmatprep.subr.mxu0 0.0
      %1852 = vmatpush1.msra.mxu0 0.0
      %1853 = vmatprep.subr.mxu0 0.0
      %1854 = vmatpush1.msra.mxu0 0.0
      %1855 = vmatprep.subr.mxu0 0.0
      %1856 = vmatpush1.msra.mxu0 0.0
      %1857 = vmatprep.subr.mxu0 0.0
      %1858 = vmatpush1.msra.mxu0 0.0
      %1859 = vmatprep.subr.mxu0 0.0
      %1860 = vmatpush1.msra.mxu0 0.0
      %1861 = vmatprep.subr.mxu0 0.0
      %1862 = vmatpush1.msra.mxu0 0.0
      %1863 = vmatprep.subr.mxu0 0.0
      %1864 = vmatpush1.msra.mxu0 0.0
      %1865 = vmatprep.subr.mxu0 0.0
      %1866 = vmatpush1.msra.mxu0 0.0
      %1867 = vmatprep.subr.mxu0 0.0
      %1868 = vmatpush1.msra.mxu0 0.0
      %1869 = vmatprep.subr.mxu0 0.0
      %1870 = vmatpush1.msra.mxu0 0.0
      %1871 = vmatprep.subr.mxu0 0.0
      %1872 = vmatpush1.msra.mxu0 0.0
      %1873 = vmatprep.subr.mxu0 0.0
      %1874 = vmatpush1.msra.mxu0 0.0
      %1875 = vmatprep.subr.mxu0 0.0
      %1876 = vmatpush1.msra.mxu0 0.0
      %1877 = vmatprep.subr.mxu0 0.0
      %1878 = vmatpush1.msra.mxu0 0.0
      %1879 = vmatprep.subr.mxu0 0.0
      %1880 = vmatpush1.msra.mxu0 0.0
      %1881 = vmatprep.mubr.f32.mxu0 0.0
      %1882 = vmatmul.mubr.f32.gmra.mrb[0].mxu0 %v1815
      %v1883 = vpop.f32.mrb[0].mxu0
      %v1884 = vadd.f32 0.0, %v1883
      %v1885 = vpop.f32.mrb[0].mxu0
      %1886 = vdwg.mxu0
      %v1887 = vadd.f32 %v1814, %v1884
      %v1888 = vxor.u32 %v1887, 2147483648
      %v1889 = vmul.f32 %v1888, 1.442695
      %v1890 = vpow.pop %v1889
      %v1891 = vadd.f32 %v1890, 1.0
      %v1892 = vrcp.pop %v1891
      %v1893 = vmul.f32 1.0, %v1892
      %v1894 = vtanh.pop %v1887
      %v1895 = vmul.f32 %v1893, %v1802
      %1897 = vrot.lane.b32.xlu0 %v1894, 64
      %v1898 = vpop.permute.xlu0 %1897
      %v1900 = vmul.f32 %v1893, %v1898
      %1902 = vrot.lane.b32.xlu0 %v1900, 32
      %v1903 = vpop.permute.xlu0 %1902
      %v1905 = vadd.f32 %v1895, %v1903
      %v1906 = vtanh.pop %v1905
      %1908 = vrot.lane.b32.xlu0 %v1906, 64
      %v1909 = vpop.permute.xlu0 %1908
      %v1911 = vmul.f32 %v1893, %v1909
      %1913 = vrot.lane.b32.xlu0 %v1911, 32
      %v1914 = vpop.permute.xlu0 %1913
      %1916 = vst.msk [vmem:[#allocation2 + $0xe] sm:$0x3] %vm260, %v1914
    $region46: #{residual_lstm_forward.1} parent=1 // loop_footer
      %s988 = sadd.s32 1, %s984
    $region47: #{residual_lstm_forward.1} parent=1 // loop_footer_branch
      %983 = sbr.rel target = $region43
    $region48: #{residual_lstm_forward.1} parent=1 // loop_exit
      _
    %v1917 = vld [vmem:[#allocation2 + $0xe] sm:$0x3]
    %v1918 = vld [vmem:[%s5] sm:$0x3]
    %v1919 = vadd.f32 %v1917, %v1918
    %v1920 = vld [vmem:[%s6] sm:$0xff]
    %v1921 = vld [vmem:[%s6 + $0x8] sm:$0xff]
    %v1922 = vld [vmem:[%s6 + $0x10] sm:$0xff]
    %v1923 = vld [vmem:[%s6 + $0x18] sm:$0xff]
    %v1924 = vld [vmem:[%s7] sm:$0x1]
    %v1926 = vlaneseq
    %v1927 = vshrl.u32 %v1926, 7
    %v1928 = vsub.s32 0, %v1927
    %v1929 = vrot.slane %v1924, %v1928
    %v1932 = vsel %vm157, %v1919, 0
    %1934 = vmatprep.subr.mxu0 0.0
    %1935 = vmatpush1.msra.mxu0 %v1920
    %1936 = vmatprep.subr.mxu0 0.0
    %1937 = vmatpush1.msra.mxu0 %v1921
    %1938 = vmatprep.subr.mxu0 0.0
    %1939 = vmatpush1.msra.mxu0 %v1922
    %1940 = vmatprep.subr.mxu0 0.0
    %1941 = vmatpush1.msra.mxu0 %v1923
    %1942 = vmatprep.subr.mxu0 0.0
    %1943 = vmatpush1.msra.mxu0 0.0
    %1944 = vmatprep.subr.mxu0 0.0
    %1945 = vmatpush1.msra.mxu0 0.0
    %1946 = vmatprep.subr.mxu0 0.0
    %1947 = vmatpush1.msra.mxu0 0.0
    %1948 = vmatprep.subr.mxu0 0.0
    %1949 = vmatpush1.msra.mxu0 0.0
    %1950 = vmatprep.subr.mxu0 0.0
    %1951 = vmatpush1.msra.mxu0 0.0
    %1952 = vmatprep.subr.mxu0 0.0
    %1953 = vmatpush1.msra.mxu0 0.0
    %1954 = vmatprep.subr.mxu0 0.0
    %1955 = vmatpush1.msra.mxu0 0.0
    %1956 = vmatprep.subr.mxu0 0.0
    %1957 = vmatpush1.msra.mxu0 0.0
    %1958 = vmatprep.subr.mxu0 0.0
    %1959 = vmatpush1.msra.mxu0 0.0
    %1960 = vmatprep.subr.mxu0 0.0
    %1961 = vmatpush1.msra.mxu0 0.0
    %1962 = vmatprep.subr.mxu0 0.0
    %1963 = vmatpush1.msra.mxu0 0.0
    %1964 = vmatprep.subr.mxu0 0.0
    %1965 = vmatpush1.msra.mxu0 0.0
    %1966 = vmatprep.subr.mxu0 0.0
    %1967 = vmatpush1.msra.mxu0 0.0
    %1968 = vmatprep.subr.mxu0 0.0
    %1969 = vmatpush1.msra.mxu0 0.0
    %1970 = vmatprep.subr.mxu0 0.0
    %1971 = vmatpush1.msra.mxu0 0.0
    %1972 = vmatprep.subr.mxu0 0.0
    %1973 = vmatpush1.msra.mxu0 0.0
    %1974 = vmatprep.subr.mxu0 0.0
    %1975 = vmatpush1.msra.mxu0 0.0
    %1976 = vmatprep.subr.mxu0 0.0
    %1977 = vmatpush1.msra.mxu0 0.0
    %1978 = vmatprep.subr.mxu0 0.0
    %1979 = vmatpush1.msra.mxu0 0.0
    %1980 = vmatprep.subr.mxu0 0.0
    %1981 = vmatpush1.msra.mxu0 0.0
    %1982 = vmatprep.subr.mxu0 0.0
    %1983 = vmatpush1.msra.mxu0 0.0
    %1984 = vmatprep.subr.mxu0 0.0
    %1985 = vmatpush1.msra.mxu0 0.0
    %1986 = vmatprep.subr.mxu0 0.0
    %1987 = vmatpush1.msra.mxu0 0.0
    %1988 = vmatprep.subr.mxu0 0.0
    %1989 = vmatpush1.msra.mxu0 0.0
    %1990 = vmatprep.subr.mxu0 0.0
    %1991 = vmatpush1.msra.mxu0 0.0
    %1992 = vmatprep.subr.mxu0 0.0
    %1993 = vmatpush1.msra.mxu0 0.0
    %1994 = vmatprep.subr.mxu0 0.0
    %1995 = vmatpush1.msra.mxu0 0.0
    %1996 = vmatprep.subr.mxu0 0.0
    %1997 = vmatpush1.msra.mxu0 0.0
    %1998 = vmatprep.mubr.f32.mxu0 0.0
    %1999 = vmatmul.mubr.f32.gmra.mrb[0].mxu0 %v1932
    %v2000 = vpop.f32.mrb[0].mxu0
    %v2001 = vadd.f32 %v1929, %v2000
    %v2002 = vpop.f32.mrb[0].mxu0
    %2003 = vdwg.mxu0
    %vm2004 = vcmask 25600
    %2005 = vst.msk [vmem:[#allocation9] sm:$0x3] %vm2004, %v2001
    // Predicated region
    $region49: #{residual_lstm_forward.1} parent=1 // pred_check
      _
    $region50: #{residual_lstm_forward.1} parent=1 // pred_check_branch
      %2007 = sbr.rel (0) target = $region52
    $region51: #{residual_lstm_forward.1} parent=1 // pred_region
      %s2009 = ssub.s32 32, 32
      %2010 = vsyncadd [#allocation6], %s2009
      %s2012 = sshll.u32 [#allocation9], 4
      %s2013 = int_to_ptr.vmem [resolvable:$true] %s2012
      %2015 = dma.vmem_to_hbm [thread:$0]  %s2013, 32, %s8, [#allocation6]
    $region52: #{residual_lstm_forward.1} parent=1 // pred_fallthru
      _
    // Predicated region
    $region53: #{residual_lstm_forward.1} parent=1 // pred_check
      _
    $region54: #{residual_lstm_forward.1} parent=1 // pred_check_branch
      %2017 = sbr.rel (0) target = $region56
    $region55: #{residual_lstm_forward.1} parent=1 // pred_region
      %2018 = dma.done [#allocation6], 32
    $region56: #{residual_lstm_forward.1} parent=1 // pred_fallthru
      _
    %2019 = vsyncpa [#allocation5], 1
    %2020 = vsyncpa [#allocation8], 1
    %2021 = vsyncpa [#allocation6], 1

</llo_original>
